<compile_context>
chip_gen: v7x
topology: tpu7x:2x2x1
jax: 0.10.0
libtpu: 0.0.40
codegen_flags: <defaults>
</compile_context>

<pallas_src>
import math

import jax
import jax.numpy as jnp
from jax.experimental import pallas as pl
from jax.experimental.pallas import tpu as pltpu


def _make_fused_attention_kernel(heads, dim_head, scale, project_out):
    inner = heads * dim_head

    def body(x_ref, wqkv_ref, wout_ref, bout_ref, o_ref):
        x = x_ref[...]                                            # (N, dim)

        # to_qkv: one MXU matmul with f32 accumulation; qkv stays in VMEM.
        qkv = jnp.dot(x, wqkv_ref[...],
                      preferred_element_type=jnp.float32)         # (N, 3*inner)

        # Fold the attention scale into q once (cheaper than scaling scores).
        q_all = qkv[:, :inner] * scale                            # (N, inner) f32
        k_all = qkv[:, inner:2 * inner]                           # (N, inner) f32
        v_all = qkv[:, 2 * inner:]                                # (N, inner) f32

        acc = None
        for h in range(heads):                                    # static unroll
            sl = slice(h * dim_head, (h + 1) * dim_head)
            q_h = q_all[:, sl]                                    # (N, D)
            k_h = k_all[:, sl]                                    # (N, D)
            v_h = v_all[:, sl]                                    # (N, D)

            # scores = q_h @ k_h^T  -> (N, N), f32 on the MXU.
            s = jax.lax.dot_general(q_h, k_h, (((1,), (1,)), ((), ())),
                                    preferred_element_type=jnp.float32)
            # Single-pass softmax: the whole score row is resident (small N).
            p = jnp.exp(s - jnp.max(s, axis=-1, keepdims=True))
            attn = p * pl.reciprocal(jnp.sum(p, axis=-1, keepdims=True),
                                     approx=False)
            o_h = jnp.dot(attn, v_h,
                          preferred_element_type=jnp.float32)     # (N, D)

            if project_out:
                # Fused to_out: accumulate o_h @ Wout[hD:(h+1)D, :] per head
                # instead of concatenating heads and launching another matmul.
                w_h = wout_ref[sl, :]                             # (D, dim)
                part = jnp.dot(o_h.astype(w_h.dtype), w_h,
                               preferred_element_type=jnp.float32)
                acc = part if acc is None else acc + part
            else:
                o_ref[:, sl] = o_h.astype(o_ref.dtype)

        if project_out:
            o_ref[...] = (acc + bout_ref[...]).astype(o_ref.dtype)

    if project_out:
        return body

    def body_noproj(x_ref, wqkv_ref, o_ref):
        body(x_ref, wqkv_ref, None, None, o_ref)

    return body_noproj


def attention_forward(x, w_qkv, w_out=None, b_out=None, *, heads, dim_head):
    """x: (B, N, dim); w_qkv: (dim, 3*heads*dim_head); w_out: (inner, dim); b_out: (dim,)."""
    B, N, dim = x.shape
    inner = heads * dim_head
    scale = float(dim_head) ** -0.5
    project_out = not (heads == 1 and dim_head == dim)
    out_dim = dim if project_out else inner
    itemsize = jnp.dtype(x.dtype).itemsize

    # Per-grid-step VMEM footprint sanity check (double-buffered inputs + f32
    # intermediates). TokenLearner shapes use well under 1 MiB.
    footprint = (2 * N * dim * itemsize                              # x block
                 + 2 * dim * 3 * inner * itemsize                    # w_qkv
                 + (2 * inner * out_dim * itemsize if project_out else 0)
                 + N * 3 * inner * 4                                 # qkv (f32)
                 + heads * N * N * 4                                 # scores
                 + N * inner * 4                                     # head outputs
                 + 2 * N * out_dim * itemsize)                       # output block
    assert footprint < 40 * 1024 * 1024, (
        f"fused attention kernel assumes the per-batch working set fits VMEM "
        f"(got ~{footprint} bytes)")
    # TODO(synk): add a tiled (q-tile grid + resident-KV) fallback path for large N/dim.

    kernel = _make_fused_attention_kernel(heads, dim_head, scale, project_out)

    flops = 2 * B * N * dim * 3 * inner + 4 * B * heads * N * N * dim_head
    weight_bytes = w_qkv.size
    if project_out:
        flops += 2 * B * N * inner * out_dim
        weight_bytes += w_out.size + b_out.size
    cost = pl.CostEstimate(
        flops=flops,
        transcendentals=B * heads * N * N,
        bytes_accessed=(x.size + weight_bytes + B * N * out_dim) * itemsize,
    )

    cparams = pltpu.CompilerParams(
        # Batch axis shards across TensorCores (important on v7x's 2 TCs).
        dimension_semantics=("parallel",),
        vmem_limit_bytes=32 * 1024 * 1024,   # well under the 64 MiB v7x physical VMEM
    )

    x_spec = pl.BlockSpec((None, N, dim), lambda b: (b, 0, 0))
    wqkv_spec = pl.BlockSpec((dim, 3 * inner), lambda b: (0, 0))
    o_spec = pl.BlockSpec((None, N, out_dim), lambda b: (b, 0, 0))

    if project_out:
        b2 = b_out.reshape(1, out_dim)
        return pl.pallas_call(
            kernel,
            out_shape=jax.ShapeDtypeStruct((B, N, out_dim), x.dtype),
            grid_spec=pltpu.PrefetchScalarGridSpec(
                num_scalar_prefetch=0,
                grid=(B,),
                in_specs=[x_spec,
                          wqkv_spec,
                          pl.BlockSpec((inner, out_dim), lambda b: (0, 0)),
                          pl.BlockSpec((1, out_dim), lambda b: (0, 0))],
                out_specs=o_spec,
            ),
            compiler_params=cparams,
            cost_estimate=cost,
        )(x, w_qkv, w_out, b2)

    return pl.pallas_call(
        kernel,
        out_shape=jax.ShapeDtypeStruct((B, N, out_dim), x.dtype),
        grid_spec=pltpu.PrefetchScalarGridSpec(
            num_scalar_prefetch=0,
            grid=(B,),
            in_specs=[x_spec, wqkv_spec],
            out_specs=o_spec,
        ),
        compiler_params=cparams,
        cost_estimate=cost,
    )(x, w_qkv)


def _reference(x, w_qkv, w_out, b_out, *, heads, dim_head):
    B, N, dim = x.shape
    inner = heads * dim_head
    scale = float(dim_head) ** -0.5
    qkv = jnp.einsum("bnd,de->bne", x, w_qkv)
    qkv = qkv.reshape(B, N, 3, heads, dim_head)
    q = jnp.transpose(qkv[:, :, 0], (0, 2, 1, 3))
    k = jnp.transpose(qkv[:, :, 1], (0, 2, 1, 3))
    v = jnp.transpose(qkv[:, :, 2], (0, 2, 1, 3))
    dots = jnp.einsum("bhnd,bhmd->bhnm", q, k) * scale
    attn = jax.nn.softmax(dots, axis=-1)
    out = jnp.einsum("bhnm,bhmd->bhnd", attn, v)
    out = jnp.transpose(out, (0, 2, 1, 3)).reshape(B, N, inner)
    if not (heads == 1 and dim_head == dim):
        out = jnp.einsum("bni,id->bnd", out, w_out) + b_out
    return out


if __name__ == "__main__":
    # Small shapes consistent with the module defaults: heads=8, dim_head=64.
    B, N, dim = 2, 8, 32
    heads, dim_head = 8, 64
    inner = heads * dim_head

    key = jax.random.PRNGKey(0)
    kx, kq, kw, kb = jax.random.split(key, 4)

    x = jax.random.normal(kx, (B, N, dim), dtype=jnp.float32)

    # PyTorch-style Linear init ranges; weights stored transposed ((in, out)).
    lim_qkv = 1.0 / math.sqrt(dim)
    w_qkv = jax.random.uniform(kq, (dim, 3 * inner), minval=-lim_qkv,
                               maxval=lim_qkv, dtype=jnp.float32)
    lim_out = 1.0 / math.sqrt(inner)
    w_out = jax.random.uniform(kw, (inner, dim), minval=-lim_out,
                               maxval=lim_out, dtype=jnp.float32)
    b_out = jax.random.uniform(kb, (dim,), minval=-lim_out,
                               maxval=lim_out, dtype=jnp.float32)

    out = attention_forward(x, w_qkv, w_out, b_out, heads=heads, dim_head=dim_head)
    out = jax.block_until_ready(out)

    ref = _reference(x, w_qkv, w_out, b_out, heads=heads, dim_head=dim_head)
    assert out.shape == (B, N, dim)
    err = float(jnp.max(jnp.abs(out - ref)))
    assert jnp.allclose(out, ref, atol=1e-4, rtol=1e-4), err

    print("KERNEL_OK")
</pallas_src>

<mosaic_0001>
module attributes {stable_mosaic.version = 11 : i64} {
  func.func @body(%arg0: i32, %arg1: memref<1x8x32xf32, #tpu.memory_space<vmem>>, %arg2: memref<32x1536xf32, #tpu.memory_space<vmem>>, %arg3: memref<512x32xf32, #tpu.memory_space<vmem>>, %arg4: memref<1x32xf32, #tpu.memory_space<vmem>>, %arg5: memref<1x8x32xf32, #tpu.memory_space<vmem>>) attributes {dimension_semantics = [#tpu.dimension_semantics<parallel>], iteration_bounds = array<i64: 2>, scalar_prefetch = 0 : i64, scratch_operands = 0 : i64, tpu.core_type = #tpu.core_type<tc>, window_params = [{transform_indices = @transform_0, window_bounds = array<i64: 1, 8, 32>}, {pipeline_mode = #tpu.pipeline_mode<synchronous>, transform_indices = @transform_1, window_bounds = array<i64: 32, 1536>}, {pipeline_mode = #tpu.pipeline_mode<synchronous>, transform_indices = @transform_2, window_bounds = array<i64: 512, 32>}, {pipeline_mode = #tpu.pipeline_mode<synchronous>, transform_indices = @transform_3, window_bounds = array<i64: 1, 32>}, {transform_indices = @transform_4, window_bounds = array<i64: 1, 8, 32>}]} {
    %c0 = arith.constant 0 : index
    %c0_0 = arith.constant 0 : index
    %c0_1 = arith.constant 0 : index
    %0 = vector.load %arg1[%c0, %c0_0, %c0_1] : memref<1x8x32xf32, #tpu.memory_space<vmem>>, vector<1x8x32xf32>
    %1 = vector.shape_cast %0 : vector<1x8x32xf32> to vector<8x32xf32>
    %c0_2 = arith.constant 0 : index
    %c0_3 = arith.constant 0 : index
    %2 = vector.load %arg2[%c0_2, %c0_3] : memref<32x1536xf32, #tpu.memory_space<vmem>>, vector<32x1536xf32>
    %cst = arith.constant dense<0.000000e+00> : vector<8x1536xf32>
    %3 = tpu.matmul %1, %2, %cst {dimension_numbers = #tpu.dot_dimension_numbers<[1], [0], [0], [1], [0, 0, 1, 1], [], []>} : vector<8x32xf32>, vector<32x1536xf32>, vector<8x1536xf32> -> vector<8x1536xf32>
    %4 = vector.extract_strided_slice %3 {offsets = [0, 0], sizes = [8, 512], strides = [1, 1]} : vector<8x1536xf32> to vector<8x512xf32>
    %cst_4 = arith.constant 1.250000e-01 : f32
    %5 = vector.broadcast %cst_4 : f32 to vector<8x512xf32>
    %6 = arith.mulf %4, %5 : vector<8x512xf32>
    %7 = vector.extract_strided_slice %3 {offsets = [0, 512], sizes = [8, 512], strides = [1, 1]} : vector<8x1536xf32> to vector<8x512xf32>
    %8 = vector.extract_strided_slice %3 {offsets = [0, 1024], sizes = [8, 512], strides = [1, 1]} : vector<8x1536xf32> to vector<8x512xf32>
    %9 = vector.extract_strided_slice %6 {offsets = [0, 0], sizes = [8, 64], strides = [1, 1]} : vector<8x512xf32> to vector<8x64xf32>
    %10 = vector.extract_strided_slice %7 {offsets = [0, 0], sizes = [8, 64], strides = [1, 1]} : vector<8x512xf32> to vector<8x64xf32>
    %11 = vector.extract_strided_slice %8 {offsets = [0, 0], sizes = [8, 64], strides = [1, 1]} : vector<8x512xf32> to vector<8x64xf32>
    %cst_5 = arith.constant dense<0.000000e+00> : vector<8x8xf32>
    %12 = tpu.matmul %9, %10, %cst_5 {dimension_numbers = #tpu.dot_dimension_numbers<[1], [1], [0], [0], [0, 0, 1, 0], [], []>} : vector<8x64xf32>, vector<8x64xf32>, vector<8x8xf32> -> vector<8x8xf32>
    %cst_6 = arith.constant dense<0xFF800000> : vector<8xf32>
    %13 = vector.multi_reduction <maximumf>, %12, %cst_6 [1] : vector<8x8xf32> to vector<8xf32>
    %14 = vector.shape_cast %13 : vector<8xf32> to vector<8x1xf32>
    %15 = vector.broadcast %14 : vector<8x1xf32> to vector<8x8xf32>
    %16 = arith.subf %12, %15 : vector<8x8xf32>
    %17 = math.exp %16 : vector<8x8xf32>
    %cst_7 = arith.constant dense<0.000000e+00> : vector<8xf32>
    %18 = vector.multi_reduction <add>, %17, %cst_7 [1] : vector<8x8xf32> to vector<8xf32>
    %19 = vector.shape_cast %18 : vector<8xf32> to vector<8x1xf32>
    %20 = tpu.reciprocal %19 : vector<8x1xf32> -> vector<8x1xf32>
    %21 = vector.broadcast %20 : vector<8x1xf32> to vector<8x8xf32>
    %22 = arith.mulf %17, %21 : vector<8x8xf32>
    %cst_8 = arith.constant dense<0.000000e+00> : vector<8x64xf32>
    %23 = tpu.matmul %22, %11, %cst_8 {dimension_numbers = #tpu.dot_dimension_numbers<[1], [0], [0], [1], [0, 0, 1, 1], [], []>} : vector<8x8xf32>, vector<8x64xf32>, vector<8x64xf32> -> vector<8x64xf32>
    %c0_9 = arith.constant 0 : index
    %c0_10 = arith.constant 0 : index
    %24 = vector.load %arg3[%c0_9, %c0_10] : memref<512x32xf32, #tpu.memory_space<vmem>>, vector<64x32xf32>
    %cst_11 = arith.constant dense<0.000000e+00> : vector<8x32xf32>
    %25 = tpu.matmul %23, %24, %cst_11 {dimension_numbers = #tpu.dot_dimension_numbers<[1], [0], [0], [1], [0, 0, 1, 1], [], []>} : vector<8x64xf32>, vector<64x32xf32>, vector<8x32xf32> -> vector<8x32xf32>
    %26 = vector.extract_strided_slice %6 {offsets = [0, 64], sizes = [8, 64], strides = [1, 1]} : vector<8x512xf32> to vector<8x64xf32>
    %27 = vector.extract_strided_slice %7 {offsets = [0, 64], sizes = [8, 64], strides = [1, 1]} : vector<8x512xf32> to vector<8x64xf32>
    %28 = vector.extract_strided_slice %8 {offsets = [0, 64], sizes = [8, 64], strides = [1, 1]} : vector<8x512xf32> to vector<8x64xf32>
    %cst_12 = arith.constant dense<0.000000e+00> : vector<8x8xf32>
    %29 = tpu.matmul %26, %27, %cst_12 {dimension_numbers = #tpu.dot_dimension_numbers<[1], [1], [0], [0], [0, 0, 1, 0], [], []>} : vector<8x64xf32>, vector<8x64xf32>, vector<8x8xf32> -> vector<8x8xf32>
    %cst_13 = arith.constant dense<0xFF800000> : vector<8xf32>
    %30 = vector.multi_reduction <maximumf>, %29, %cst_13 [1] : vector<8x8xf32> to vector<8xf32>
    %31 = vector.shape_cast %30 : vector<8xf32> to vector<8x1xf32>
    %32 = vector.broadcast %31 : vector<8x1xf32> to vector<8x8xf32>
    %33 = arith.subf %29, %32 : vector<8x8xf32>
    %34 = math.exp %33 : vector<8x8xf32>
    %cst_14 = arith.constant dense<0.000000e+00> : vector<8xf32>
    %35 = vector.multi_reduction <add>, %34, %cst_14 [1] : vector<8x8xf32> to vector<8xf32>
    %36 = vector.shape_cast %35 : vector<8xf32> to vector<8x1xf32>
    %37 = tpu.reciprocal %36 : vector<8x1xf32> -> vector<8x1xf32>
    %38 = vector.broadcast %37 : vector<8x1xf32> to vector<8x8xf32>
    %39 = arith.mulf %34, %38 : vector<8x8xf32>
    %cst_15 = arith.constant dense<0.000000e+00> : vector<8x64xf32>
    %40 = tpu.matmul %39, %28, %cst_15 {dimension_numbers = #tpu.dot_dimension_numbers<[1], [0], [0], [1], [0, 0, 1, 1], [], []>} : vector<8x8xf32>, vector<8x64xf32>, vector<8x64xf32> -> vector<8x64xf32>
    %c64 = arith.constant 64 : index
    %c0_16 = arith.constant 0 : index
    %41 = vector.load %arg3[%c64, %c0_16] : memref<512x32xf32, #tpu.memory_space<vmem>>, vector<64x32xf32>
    %cst_17 = arith.constant dense<0.000000e+00> : vector<8x32xf32>
    %42 = tpu.matmul %40, %41, %cst_17 {dimension_numbers = #tpu.dot_dimension_numbers<[1], [0], [0], [1], [0, 0, 1, 1], [], []>} : vector<8x64xf32>, vector<64x32xf32>, vector<8x32xf32> -> vector<8x32xf32>
    %43 = arith.addf %25, %42 : vector<8x32xf32>
    %44 = vector.extract_strided_slice %6 {offsets = [0, 128], sizes = [8, 64], strides = [1, 1]} : vector<8x512xf32> to vector<8x64xf32>
    %45 = vector.extract_strided_slice %7 {offsets = [0, 128], sizes = [8, 64], strides = [1, 1]} : vector<8x512xf32> to vector<8x64xf32>
    %46 = vector.extract_strided_slice %8 {offsets = [0, 128], sizes = [8, 64], strides = [1, 1]} : vector<8x512xf32> to vector<8x64xf32>
    %cst_18 = arith.constant dense<0.000000e+00> : vector<8x8xf32>
    %47 = tpu.matmul %44, %45, %cst_18 {dimension_numbers = #tpu.dot_dimension_numbers<[1], [1], [0], [0], [0, 0, 1, 0], [], []>} : vector<8x64xf32>, vector<8x64xf32>, vector<8x8xf32> -> vector<8x8xf32>
    %cst_19 = arith.constant dense<0xFF800000> : vector<8xf32>
    %48 = vector.multi_reduction <maximumf>, %47, %cst_19 [1] : vector<8x8xf32> to vector<8xf32>
    %49 = vector.shape_cast %48 : vector<8xf32> to vector<8x1xf32>
    %50 = vector.broadcast %49 : vector<8x1xf32> to vector<8x8xf32>
    %51 = arith.subf %47, %50 : vector<8x8xf32>
    %52 = math.exp %51 : vector<8x8xf32>
    %cst_20 = arith.constant dense<0.000000e+00> : vector<8xf32>
    %53 = vector.multi_reduction <add>, %52, %cst_20 [1] : vector<8x8xf32> to vector<8xf32>
    %54 = vector.shape_cast %53 : vector<8xf32> to vector<8x1xf32>
    %55 = tpu.reciprocal %54 : vector<8x1xf32> -> vector<8x1xf32>
    %56 = vector.broadcast %55 : vector<8x1xf32> to vector<8x8xf32>
    %57 = arith.mulf %52, %56 : vector<8x8xf32>
    %cst_21 = arith.constant dense<0.000000e+00> : vector<8x64xf32>
    %58 = tpu.matmul %57, %46, %cst_21 {dimension_numbers = #tpu.dot_dimension_numbers<[1], [0], [0], [1], [0, 0, 1, 1], [], []>} : vector<8x8xf32>, vector<8x64xf32>, vector<8x64xf32> -> vector<8x64xf32>
    %c128 = arith.constant 128 : index
    %c0_22 = arith.constant 0 : index
    %59 = vector.load %arg3[%c128, %c0_22] : memref<512x32xf32, #tpu.memory_space<vmem>>, vector<64x32xf32>
    %cst_23 = arith.constant dense<0.000000e+00> : vector<8x32xf32>
    %60 = tpu.matmul %58, %59, %cst_23 {dimension_numbers = #tpu.dot_dimension_numbers<[1], [0], [0], [1], [0, 0, 1, 1], [], []>} : vector<8x64xf32>, vector<64x32xf32>, vector<8x32xf32> -> vector<8x32xf32>
    %61 = arith.addf %43, %60 : vector<8x32xf32>
    %62 = vector.extract_strided_slice %6 {offsets = [0, 192], sizes = [8, 64], strides = [1, 1]} : vector<8x512xf32> to vector<8x64xf32>
    %63 = vector.extract_strided_slice %7 {offsets = [0, 192], sizes = [8, 64], strides = [1, 1]} : vector<8x512xf32> to vector<8x64xf32>
    %64 = vector.extract_strided_slice %8 {offsets = [0, 192], sizes = [8, 64], strides = [1, 1]} : vector<8x512xf32> to vector<8x64xf32>
    %cst_24 = arith.constant dense<0.000000e+00> : vector<8x8xf32>
    %65 = tpu.matmul %62, %63, %cst_24 {dimension_numbers = #tpu.dot_dimension_numbers<[1], [1], [0], [0], [0, 0, 1, 0], [], []>} : vector<8x64xf32>, vector<8x64xf32>, vector<8x8xf32> -> vector<8x8xf32>
    %cst_25 = arith.constant dense<0xFF800000> : vector<8xf32>
    %66 = vector.multi_reduction <maximumf>, %65, %cst_25 [1] : vector<8x8xf32> to vector<8xf32>
    %67 = vector.shape_cast %66 : vector<8xf32> to vector<8x1xf32>
    %68 = vector.broadcast %67 : vector<8x1xf32> to vector<8x8xf32>
    %69 = arith.subf %65, %68 : vector<8x8xf32>
    %70 = math.exp %69 : vector<8x8xf32>
    %cst_26 = arith.constant dense<0.000000e+00> : vector<8xf32>
    %71 = vector.multi_reduction <add>, %70, %cst_26 [1] : vector<8x8xf32> to vector<8xf32>
    %72 = vector.shape_cast %71 : vector<8xf32> to vector<8x1xf32>
    %73 = tpu.reciprocal %72 : vector<8x1xf32> -> vector<8x1xf32>
    %74 = vector.broadcast %73 : vector<8x1xf32> to vector<8x8xf32>
    %75 = arith.mulf %70, %74 : vector<8x8xf32>
    %cst_27 = arith.constant dense<0.000000e+00> : vector<8x64xf32>
    %76 = tpu.matmul %75, %64, %cst_27 {dimension_numbers = #tpu.dot_dimension_numbers<[1], [0], [0], [1], [0, 0, 1, 1], [], []>} : vector<8x8xf32>, vector<8x64xf32>, vector<8x64xf32> -> vector<8x64xf32>
    %c192 = arith.constant 192 : index
    %c0_28 = arith.constant 0 : index
    %77 = vector.load %arg3[%c192, %c0_28] : memref<512x32xf32, #tpu.memory_space<vmem>>, vector<64x32xf32>
    %cst_29 = arith.constant dense<0.000000e+00> : vector<8x32xf32>
    %78 = tpu.matmul %76, %77, %cst_29 {dimension_numbers = #tpu.dot_dimension_numbers<[1], [0], [0], [1], [0, 0, 1, 1], [], []>} : vector<8x64xf32>, vector<64x32xf32>, vector<8x32xf32> -> vector<8x32xf32>
    %79 = arith.addf %61, %78 : vector<8x32xf32>
    %80 = vector.extract_strided_slice %6 {offsets = [0, 256], sizes = [8, 64], strides = [1, 1]} : vector<8x512xf32> to vector<8x64xf32>
    %81 = vector.extract_strided_slice %7 {offsets = [0, 256], sizes = [8, 64], strides = [1, 1]} : vector<8x512xf32> to vector<8x64xf32>
    %82 = vector.extract_strided_slice %8 {offsets = [0, 256], sizes = [8, 64], strides = [1, 1]} : vector<8x512xf32> to vector<8x64xf32>
    %cst_30 = arith.constant dense<0.000000e+00> : vector<8x8xf32>
    %83 = tpu.matmul %80, %81, %cst_30 {dimension_numbers = #tpu.dot_dimension_numbers<[1], [1], [0], [0], [0, 0, 1, 0], [], []>} : vector<8x64xf32>, vector<8x64xf32>, vector<8x8xf32> -> vector<8x8xf32>
    %cst_31 = arith.constant dense<0xFF800000> : vector<8xf32>
    %84 = vector.multi_reduction <maximumf>, %83, %cst_31 [1] : vector<8x8xf32> to vector<8xf32>
    %85 = vector.shape_cast %84 : vector<8xf32> to vector<8x1xf32>
    %86 = vector.broadcast %85 : vector<8x1xf32> to vector<8x8xf32>
    %87 = arith.subf %83, %86 : vector<8x8xf32>
    %88 = math.exp %87 : vector<8x8xf32>
    %cst_32 = arith.constant dense<0.000000e+00> : vector<8xf32>
    %89 = vector.multi_reduction <add>, %88, %cst_32 [1] : vector<8x8xf32> to vector<8xf32>
    %90 = vector.shape_cast %89 : vector<8xf32> to vector<8x1xf32>
    %91 = tpu.reciprocal %90 : vector<8x1xf32> -> vector<8x1xf32>
    %92 = vector.broadcast %91 : vector<8x1xf32> to vector<8x8xf32>
    %93 = arith.mulf %88, %92 : vector<8x8xf32>
    %cst_33 = arith.constant dense<0.000000e+00> : vector<8x64xf32>
    %94 = tpu.matmul %93, %82, %cst_33 {dimension_numbers = #tpu.dot_dimension_numbers<[1], [0], [0], [1], [0, 0, 1, 1], [], []>} : vector<8x8xf32>, vector<8x64xf32>, vector<8x64xf32> -> vector<8x64xf32>
    %c256 = arith.constant 256 : index
    %c0_34 = arith.constant 0 : index
    %95 = vector.load %arg3[%c256, %c0_34] : memref<512x32xf32, #tpu.memory_space<vmem>>, vector<64x32xf32>
    %cst_35 = arith.constant dense<0.000000e+00> : vector<8x32xf32>
    %96 = tpu.matmul %94, %95, %cst_35 {dimension_numbers = #tpu.dot_dimension_numbers<[1], [0], [0], [1], [0, 0, 1, 1], [], []>} : vector<8x64xf32>, vector<64x32xf32>, vector<8x32xf32> -> vector<8x32xf32>
    %97 = arith.addf %79, %96 : vector<8x32xf32>
    %98 = vector.extract_strided_slice %6 {offsets = [0, 320], sizes = [8, 64], strides = [1, 1]} : vector<8x512xf32> to vector<8x64xf32>
    %99 = vector.extract_strided_slice %7 {offsets = [0, 320], sizes = [8, 64], strides = [1, 1]} : vector<8x512xf32> to vector<8x64xf32>
    %100 = vector.extract_strided_slice %8 {offsets = [0, 320], sizes = [8, 64], strides = [1, 1]} : vector<8x512xf32> to vector<8x64xf32>
    %cst_36 = arith.constant dense<0.000000e+00> : vector<8x8xf32>
    %101 = tpu.matmul %98, %99, %cst_36 {dimension_numbers = #tpu.dot_dimension_numbers<[1], [1], [0], [0], [0, 0, 1, 0], [], []>} : vector<8x64xf32>, vector<8x64xf32>, vector<8x8xf32> -> vector<8x8xf32>
    %cst_37 = arith.constant dense<0xFF800000> : vector<8xf32>
    %102 = vector.multi_reduction <maximumf>, %101, %cst_37 [1] : vector<8x8xf32> to vector<8xf32>
    %103 = vector.shape_cast %102 : vector<8xf32> to vector<8x1xf32>
    %104 = vector.broadcast %103 : vector<8x1xf32> to vector<8x8xf32>
    %105 = arith.subf %101, %104 : vector<8x8xf32>
    %106 = math.exp %105 : vector<8x8xf32>
    %cst_38 = arith.constant dense<0.000000e+00> : vector<8xf32>
    %107 = vector.multi_reduction <add>, %106, %cst_38 [1] : vector<8x8xf32> to vector<8xf32>
    %108 = vector.shape_cast %107 : vector<8xf32> to vector<8x1xf32>
    %109 = tpu.reciprocal %108 : vector<8x1xf32> -> vector<8x1xf32>
    %110 = vector.broadcast %109 : vector<8x1xf32> to vector<8x8xf32>
    %111 = arith.mulf %106, %110 : vector<8x8xf32>
    %cst_39 = arith.constant dense<0.000000e+00> : vector<8x64xf32>
    %112 = tpu.matmul %111, %100, %cst_39 {dimension_numbers = #tpu.dot_dimension_numbers<[1], [0], [0], [1], [0, 0, 1, 1], [], []>} : vector<8x8xf32>, vector<8x64xf32>, vector<8x64xf32> -> vector<8x64xf32>
    %c320 = arith.constant 320 : index
    %c0_40 = arith.constant 0 : index
    %113 = vector.load %arg3[%c320, %c0_40] : memref<512x32xf32, #tpu.memory_space<vmem>>, vector<64x32xf32>
    %cst_41 = arith.constant dense<0.000000e+00> : vector<8x32xf32>
    %114 = tpu.matmul %112, %113, %cst_41 {dimension_numbers = #tpu.dot_dimension_numbers<[1], [0], [0], [1], [0, 0, 1, 1], [], []>} : vector<8x64xf32>, vector<64x32xf32>, vector<8x32xf32> -> vector<8x32xf32>
    %115 = arith.addf %97, %114 : vector<8x32xf32>
    %116 = vector.extract_strided_slice %6 {offsets = [0, 384], sizes = [8, 64], strides = [1, 1]} : vector<8x512xf32> to vector<8x64xf32>
    %117 = vector.extract_strided_slice %7 {offsets = [0, 384], sizes = [8, 64], strides = [1, 1]} : vector<8x512xf32> to vector<8x64xf32>
    %118 = vector.extract_strided_slice %8 {offsets = [0, 384], sizes = [8, 64], strides = [1, 1]} : vector<8x512xf32> to vector<8x64xf32>
    %cst_42 = arith.constant dense<0.000000e+00> : vector<8x8xf32>
    %119 = tpu.matmul %116, %117, %cst_42 {dimension_numbers = #tpu.dot_dimension_numbers<[1], [1], [0], [0], [0, 0, 1, 0], [], []>} : vector<8x64xf32>, vector<8x64xf32>, vector<8x8xf32> -> vector<8x8xf32>
    %cst_43 = arith.constant dense<0xFF800000> : vector<8xf32>
    %120 = vector.multi_reduction <maximumf>, %119, %cst_43 [1] : vector<8x8xf32> to vector<8xf32>
    %121 = vector.shape_cast %120 : vector<8xf32> to vector<8x1xf32>
    %122 = vector.broadcast %121 : vector<8x1xf32> to vector<8x8xf32>
    %123 = arith.subf %119, %122 : vector<8x8xf32>
    %124 = math.exp %123 : vector<8x8xf32>
    %cst_44 = arith.constant dense<0.000000e+00> : vector<8xf32>
    %125 = vector.multi_reduction <add>, %124, %cst_44 [1] : vector<8x8xf32> to vector<8xf32>
    %126 = vector.shape_cast %125 : vector<8xf32> to vector<8x1xf32>
    %127 = tpu.reciprocal %126 : vector<8x1xf32> -> vector<8x1xf32>
    %128 = vector.broadcast %127 : vector<8x1xf32> to vector<8x8xf32>
    %129 = arith.mulf %124, %128 : vector<8x8xf32>
    %cst_45 = arith.constant dense<0.000000e+00> : vector<8x64xf32>
    %130 = tpu.matmul %129, %118, %cst_45 {dimension_numbers = #tpu.dot_dimension_numbers<[1], [0], [0], [1], [0, 0, 1, 1], [], []>} : vector<8x8xf32>, vector<8x64xf32>, vector<8x64xf32> -> vector<8x64xf32>
    %c384 = arith.constant 384 : index
    %c0_46 = arith.constant 0 : index
    %131 = vector.load %arg3[%c384, %c0_46] : memref<512x32xf32, #tpu.memory_space<vmem>>, vector<64x32xf32>
    %cst_47 = arith.constant dense<0.000000e+00> : vector<8x32xf32>
    %132 = tpu.matmul %130, %131, %cst_47 {dimension_numbers = #tpu.dot_dimension_numbers<[1], [0], [0], [1], [0, 0, 1, 1], [], []>} : vector<8x64xf32>, vector<64x32xf32>, vector<8x32xf32> -> vector<8x32xf32>
    %133 = arith.addf %115, %132 : vector<8x32xf32>
    %134 = vector.extract_strided_slice %6 {offsets = [0, 448], sizes = [8, 64], strides = [1, 1]} : vector<8x512xf32> to vector<8x64xf32>
    %135 = vector.extract_strided_slice %7 {offsets = [0, 448], sizes = [8, 64], strides = [1, 1]} : vector<8x512xf32> to vector<8x64xf32>
    %136 = vector.extract_strided_slice %8 {offsets = [0, 448], sizes = [8, 64], strides = [1, 1]} : vector<8x512xf32> to vector<8x64xf32>
    %cst_48 = arith.constant dense<0.000000e+00> : vector<8x8xf32>
    %137 = tpu.matmul %134, %135, %cst_48 {dimension_numbers = #tpu.dot_dimension_numbers<[1], [1], [0], [0], [0, 0, 1, 0], [], []>} : vector<8x64xf32>, vector<8x64xf32>, vector<8x8xf32> -> vector<8x8xf32>
    %cst_49 = arith.constant dense<0xFF800000> : vector<8xf32>
    %138 = vector.multi_reduction <maximumf>, %137, %cst_49 [1] : vector<8x8xf32> to vector<8xf32>
    %139 = vector.shape_cast %138 : vector<8xf32> to vector<8x1xf32>
    %140 = vector.broadcast %139 : vector<8x1xf32> to vector<8x8xf32>
    %141 = arith.subf %137, %140 : vector<8x8xf32>
    %142 = math.exp %141 : vector<8x8xf32>
    %cst_50 = arith.constant dense<0.000000e+00> : vector<8xf32>
    %143 = vector.multi_reduction <add>, %142, %cst_50 [1] : vector<8x8xf32> to vector<8xf32>
    %144 = vector.shape_cast %143 : vector<8xf32> to vector<8x1xf32>
    %145 = tpu.reciprocal %144 : vector<8x1xf32> -> vector<8x1xf32>
    %146 = vector.broadcast %145 : vector<8x1xf32> to vector<8x8xf32>
    %147 = arith.mulf %142, %146 : vector<8x8xf32>
    %cst_51 = arith.constant dense<0.000000e+00> : vector<8x64xf32>
    %148 = tpu.matmul %147, %136, %cst_51 {dimension_numbers = #tpu.dot_dimension_numbers<[1], [0], [0], [1], [0, 0, 1, 1], [], []>} : vector<8x8xf32>, vector<8x64xf32>, vector<8x64xf32> -> vector<8x64xf32>
    %c448 = arith.constant 448 : index
    %c0_52 = arith.constant 0 : index
    %149 = vector.load %arg3[%c448, %c0_52] : memref<512x32xf32, #tpu.memory_space<vmem>>, vector<64x32xf32>
    %cst_53 = arith.constant dense<0.000000e+00> : vector<8x32xf32>
    %150 = tpu.matmul %148, %149, %cst_53 {dimension_numbers = #tpu.dot_dimension_numbers<[1], [0], [0], [1], [0, 0, 1, 1], [], []>} : vector<8x64xf32>, vector<64x32xf32>, vector<8x32xf32> -> vector<8x32xf32>
    %151 = arith.addf %133, %150 : vector<8x32xf32>
    %c0_54 = arith.constant 0 : index
    %c0_55 = arith.constant 0 : index
    %152 = vector.load %arg4[%c0_54, %c0_55] : memref<1x32xf32, #tpu.memory_space<vmem>>, vector<1x32xf32>
    %153 = vector.broadcast %152 : vector<1x32xf32> to vector<8x32xf32>
    %154 = arith.addf %151, %153 : vector<8x32xf32>
    %c0_56 = arith.constant 0 : index
    %c0_57 = arith.constant 0 : index
    %c0_58 = arith.constant 0 : index
    %155 = vector.load %arg5[%c0_56, %c0_57, %c0_58] : memref<1x8x32xf32, #tpu.memory_space<vmem>>, vector<1x8x32xf32>
    %156 = vector.shape_cast %155 : vector<1x8x32xf32> to vector<8x32xf32>
    %157 = vector.shape_cast %154 : vector<8x32xf32> to vector<1x8x32xf32>
    tpu.vector_store %arg5[%c0_56, %c0_57, %c0_58], %157 {strides = array<i32>} : memref<1x8x32xf32, #tpu.memory_space<vmem>>, vector<1x8x32xf32>,
    return
  }
  func.func @transform_0(%arg0: i32) -> (i32, i32, i32) {
    %c0_i32 = arith.constant 0 : i32
    %c0_i32_0 = arith.constant 0 : i32
    %c0_i32_1 = arith.constant 0 : i32
    return %arg0, %c0_i32, %c0_i32_0 : i32, i32, i32
  }
  func.func @transform_1(%arg0: i32) -> (i32, i32) {
    %c0_i32 = arith.constant 0 : i32
    %c0_i32_0 = arith.constant 0 : i32
    %c0_i32_1 = arith.constant 0 : i32
    return %c0_i32, %c0_i32_0 : i32, i32
  }
  func.func @transform_2(%arg0: i32) -> (i32, i32) {
    %c0_i32 = arith.constant 0 : i32
    %c0_i32_0 = arith.constant 0 : i32
    %c0_i32_1 = arith.constant 0 : i32
    return %c0_i32, %c0_i32_0 : i32, i32
  }
  func.func @transform_3(%arg0: i32) -> (i32, i32) {
    %c0_i32 = arith.constant 0 : i32
    %c0_i32_0 = arith.constant 0 : i32
    %c0_i32_1 = arith.constant 0 : i32
    return %c0_i32, %c0_i32_0 : i32, i32
  }
  func.func @transform_4(%arg0: i32) -> (i32, i32, i32) {
    %c0_i32 = arith.constant 0 : i32
    %c0_i32_0 = arith.constant 0 : i32
    %c0_i32_1 = arith.constant 0 : i32
    return %arg0, %c0_i32, %c0_i32_0 : i32, i32, i32
  }
}

</mosaic_0001>

<llo_original>
// kernel: tpu_custom_call.1
$region0: #{tpu_custom_call.1}
  #allocation0 [shape = 'u32[]', space=smem, size = 0x4, offset = 0x4, fixed_abs, tag = 'smem constant byte address 0x4 - core index']
  #allocation1 [shape = 'u32[144,128]{1,0:T(1,128)}', space=vmem, size = 0x12000, scoped, tag = 'internal scratch']
  %s0 = inlined_call_operand.vmem [shape: f32[2,8,32], index: 0, kind: input, shape index: {}]
  %s1 = inlined_call_operand.vmem [shape: f32[32,1536], index: 1, kind: input, shape index: {}]
  %s2 = inlined_call_operand.vmem [shape: f32[512,32], index: 2, kind: input, shape index: {}]
  %s3 = inlined_call_operand.vmem [shape: f32[1,32], index: 3, kind: input, shape index: {}]
  %s4 = inlined_call_operand.hbm [shape: f32[2,8,32], index: 4, kind: output, shape index: {}]
  %s5 = sld [smem:[#allocation0]]
  $region49: #{tpu_custom_call.1} parent=0
    _
  %s7 = ssub.s32 1, %s5
  %s8 = scalar_select 0, %s7, %s5
  $region1: #{tpu_custom_call.1} parent=0
    #allocation2 [shape = 'u8[8192]{0}', space=vmem, size = 0x2000, scoped, tag = 'output window, operand 0']
    #allocation3 [shape = 's32[2]{0}', space=sflag, size = 0x8, scoped, tag = 'scoped memory for tpu_custom_call.1']
    %9 = vsyncpa [#allocation3], 0
    %s10 = scalar_lea.sflag [#allocation3], 1
    %11 = vsyncpa %s10, 0
    loop: start=0, step=1, limit=4
    $region2: #{tpu_custom_call.1} parent=1 // loop_pre_header
      _
    $region3: #{tpu_custom_call.1} parent=1 // loop_header
      %s13 = sphi 0, %s17
      %p14 = scmp.ge.s32.totalorder %s13, 4
      %s23 = sphi 0, %s25
      %s26 = sphi 0, %s23
      %s27 = sphi 0, %s26
      %s43 = sphi 0, %s27
      %s47 = sphi 0, %s47
      %s49 = sphi 0, %s47
      %s50 = sphi 0, %s49
      %s64 = sphi 0, %s50
      %s68 = sphi 0, %s68
      %s70 = sphi 0, %s68
      %s71 = sphi 0, %s70
      %s85 = sphi 0, %s71
      %s89 = sphi 0, %s89
      %s91 = sphi 0, %s89
      %s92 = sphi 0, %s91
      %s106 = sphi 0, %s92
      %s112 = sphi 0, %s114
      %s115 = sphi 0, %s112
      %s116 = sphi 0, %s115
      %s132 = sphi 0, %s116
    $region4: #{tpu_custom_call.1} parent=1 // loop_header_branch
      %16 = sbr.rel (%p14) target = $region8
    $region5: #{tpu_custom_call.1} parent=1 // loop_body
      %s18 = ssub.s32 %s13, 1
      %s19 = ssub.s32 %s13, 2
      %s20 = sadd.s32 %s13, 1
      %s21 = ssub.s32 %s13, %s20
      %p22 = scmp.eq.s32.totalorder %s21, 0
      %s24 = sadd.s32 %s23, 1
      %s25 = scalar_select %p22, %s23, %s24
      %p28 = pneg %p22
      %p29 = scmp.eq.s32.totalorder %s13, 1
      %p30 = por %p28, %p29
      %p31 = scmp.ne.s32.totalorder %s23, %s26
      %p32 = scmp.eq.s32.totalorder %s13, 0
      %p33 = por %p31, %p32
      %p34 = scmp.ne.s32.totalorder %s23, %s26
      %p35 = scmp.eq.s32.totalorder %s18, 1
      %p36 = por %p34, %p35
      %p37 = scmp.ne.s32.totalorder %s26, %s27
      %p38 = scmp.eq.s32.totalorder %s18, 0
      %p39 = por %p37, %p38
      %p40 = scmp.ne.s32.totalorder %s26, %s27
      %p41 = scmp.eq.s32.totalorder %s19, 1
      %p42 = por %p40, %p41
      %p44 = scmp.ne.s32.totalorder %s27, %s43
      %p45 = scmp.eq.s32.totalorder %s19, 0
      %p46 = por %p44, %p45
      %s48 = sadd.s32 %s47, 1
      %p51 = scmp.eq.s32.totalorder %s13, 1
      %p52 = scmp.ne.s32.totalorder %s47, %s49
      %p53 = scmp.eq.s32.totalorder %s13, 0
      %p54 = por %p52, %p53
      %p55 = scmp.ne.s32.totalorder %s47, %s49
      %p56 = scmp.eq.s32.totalorder %s18, 1
      %p57 = por %p55, %p56
      %p58 = scmp.ne.s32.totalorder %s49, %s50
      %p59 = scmp.eq.s32.totalorder %s18, 0
      %p60 = por %p58, %p59
      %p61 = scmp.ne.s32.totalorder %s49, %s50
      %p62 = scmp.eq.s32.totalorder %s19, 1
      %p63 = por %p61, %p62
      %p65 = scmp.ne.s32.totalorder %s50, %s64
      %p66 = scmp.eq.s32.totalorder %s19, 0
      %p67 = por %p65, %p66
      %s69 = sadd.s32 %s68, 1
      %p72 = scmp.eq.s32.totalorder %s13, 1
      %p73 = scmp.ne.s32.totalorder %s68, %s70
      %p74 = scmp.eq.s32.totalorder %s13, 0
      %p75 = por %p73, %p74
      %p76 = scmp.ne.s32.totalorder %s68, %s70
      %p77 = scmp.eq.s32.totalorder %s18, 1
      %p78 = por %p76, %p77
      %p79 = scmp.ne.s32.totalorder %s70, %s71
      %p80 = scmp.eq.s32.totalorder %s18, 0
      %p81 = por %p79, %p80
      %p82 = scmp.ne.s32.totalorder %s70, %s71
      %p83 = scmp.eq.s32.totalorder %s19, 1
      %p84 = por %p82, %p83
      %p86 = scmp.ne.s32.totalorder %s71, %s85
      %p87 = scmp.eq.s32.totalorder %s19, 0
      %p88 = por %p86, %p87
      %s90 = sadd.s32 %s89, 1
      %p93 = scmp.eq.s32.totalorder %s13, 1
      %p94 = scmp.ne.s32.totalorder %s89, %s91
      %p95 = scmp.eq.s32.totalorder %s13, 0
      %p96 = por %p94, %p95
      %p97 = scmp.ne.s32.totalorder %s89, %s91
      %p98 = scmp.eq.s32.totalorder %s18, 1
      %p99 = por %p97, %p98
      %p100 = scmp.ne.s32.totalorder %s91, %s92
      %p101 = scmp.eq.s32.totalorder %s18, 0
      %p102 = por %p100, %p101
      %p103 = scmp.ne.s32.totalorder %s91, %s92
      %p104 = scmp.eq.s32.totalorder %s19, 1
      %p105 = por %p103, %p104
      %p107 = scmp.ne.s32.totalorder %s92, %s106
      %p108 = scmp.eq.s32.totalorder %s19, 0
      %p109 = por %p107, %p108
      %s110 = ssub.s32 %s13, %s20
      %p111 = scmp.eq.s32.totalorder %s110, 0
      %s113 = sadd.s32 %s112, 1
      %s114 = scalar_select %p111, %s112, %s113
      %p117 = pneg %p111
      %p118 = scmp.eq.s32.totalorder %s13, 1
      %p119 = por %p117, %p118
      %p120 = scmp.ne.s32.totalorder %s112, %s115
      %p121 = scmp.eq.s32.totalorder %s13, 0
      %p122 = por %p120, %p121
      %p123 = scmp.ne.s32.totalorder %s112, %s115
      %p124 = scmp.eq.s32.totalorder %s18, 1
      %p125 = por %p123, %p124
      %p126 = scmp.ne.s32.totalorder %s115, %s116
      %p127 = scmp.eq.s32.totalorder %s18, 0
      %p128 = por %p126, %p127
      %p129 = scmp.ne.s32.totalorder %s115, %s116
      %p130 = scmp.eq.s32.totalorder %s19, 1
      %p131 = por %p129, %p130
      %p133 = scmp.ne.s32.totalorder %s116, %s132
      %p134 = scmp.eq.s32.totalorder %s19, 0
      %p135 = por %p133, %p134
      %p136 = scmp.le.s32.totalorder 1, %s13
      %p137 = scmp.lt.s32.totalorder %s13, 3
      %p138 = pnand %p136, %p137
      %p139 = pneg %p138
      // Predicated region
      $region9: #{tpu_custom_call.1} parent=5 // pred_check
        _
      $region10: #{tpu_custom_call.1} parent=5 // pred_check_branch
        %141 = sbr.rel (%p138) target = $region12
      $region11: #{tpu_custom_call.1} parent=5 // pred_region
        %s142 = ssub.s32 %s13, 1
        // Predicated region
        $region13: #{tpu_custom_call.1} parent=11 // pred_check
          %p143 = pneg %p60
        $region14: #{tpu_custom_call.1} parent=11 // pred_check_branch
          %145 = sbr.rel (%p143) target = $region16
        $region15: #{tpu_custom_call.1} parent=11 // pred_region
          _
        $region16: #{tpu_custom_call.1} parent=11 // pred_fallthru
          _
        // Predicated region
        $region17: #{tpu_custom_call.1} parent=11 // pred_check
          %p146 = pneg %p81
        $region18: #{tpu_custom_call.1} parent=11 // pred_check_branch
          %148 = sbr.rel (%p146) target = $region20
        $region19: #{tpu_custom_call.1} parent=11 // pred_region
          _
        $region20: #{tpu_custom_call.1} parent=11 // pred_fallthru
          _
        // Predicated region
        $region21: #{tpu_custom_call.1} parent=11 // pred_check
          %p149 = pneg %p102
        $region22: #{tpu_custom_call.1} parent=11 // pred_check_branch
          %151 = sbr.rel (%p149) target = $region24
        $region23: #{tpu_custom_call.1} parent=11 // pred_region
          _
        $region24: #{tpu_custom_call.1} parent=11 // pred_fallthru
          _
      $region12: #{tpu_custom_call.1} parent=5 // pred_fallthru
        _
      %p152 = scmp.lt.s32.totalorder %s13, 2
      // Predicated region
      $region25: #{tpu_custom_call.1} parent=5 // pred_check
        %p153 = pneg %p152
      $region26: #{tpu_custom_call.1} parent=5 // pred_check_branch
        %155 = sbr.rel (%p153) target = $region28
      $region27: #{tpu_custom_call.1} parent=5 // pred_region
        // Predicated region
        $region29: #{tpu_custom_call.1} parent=27 // pred_check
          %p156 = pneg %p33
        $region30: #{tpu_custom_call.1} parent=27 // pred_check_branch
          %158 = sbr.rel (%p156) target = $region32
        $region31: #{tpu_custom_call.1} parent=27 // pred_region
          %p159 = scmp.lt.s32.totalorder %s13, 1
          %s160 = scalar_select %p159, %s13, 1
          %s161 = smul.addr %s160, 8
          %s162 = scalar_lea.vmem %s0, %s161
        $region32: #{tpu_custom_call.1} parent=27 // pred_fallthru
          _
      $region28: #{tpu_custom_call.1} parent=5 // pred_fallthru
        _
      %p163 = scmp.le.s32.totalorder 1, %s13
      %p164 = scmp.lt.s32.totalorder %s13, 3
      %p165 = pnand %p163, %p164
      %p166 = pneg %p165
      // Predicated region
      $region33: #{tpu_custom_call.1} parent=5 // pred_check
        _
      $region34: #{tpu_custom_call.1} parent=5 // pred_check_branch
        %168 = sbr.rel (%p165) target = $region36
      $region35: #{tpu_custom_call.1} parent=5 // pred_region
        %s169 = ssub.s32 %s13, 1
        %p170 = scmp.lt.s32.totalorder %s18, 1
        %s171 = scalar_select %p170, %s18, 1
        %s172 = smul.addr %s171, 8
        %s173 = scalar_lea.vmem %s0, %s172
        %p174 = pneg %p39
        %p175 = pneg %p36
        %p176 = pneg %p60
        %p177 = pneg %p57
        %p178 = pneg %p81
        %p179 = pneg %p78
        %p180 = pneg %p102
        %p181 = pneg %p99
        %p182 = pneg %p128
        %p183 = pneg %p125
        %s184 = sand.u32 %s115, 1
        %s185 = scalar_lea.sflag [#allocation3], %s184
        %s186 = sand.u32 %s115, 1
        %s187 = smul.addr %s186, 8
        %s188 = scalar_lea.vmem [#allocation2], %s187
        %p189 = scmp.lt.s32.totalorder %s18, 1
        %s190 = scalar_select %p189, %s18, 1
        %s191 = smul.addr %s190, 8
        %s192 = scalar_lea.vmem %s0, %s191
        %v193 = vld [vmem:[%s192] sm:$0xff]
        %v194 = vld [vmem:[%s1] sm:$0xff]
        %v195 = vld [vmem:[%s1 + $0x8] sm:$0xff]
        %v196 = vld [vmem:[%s1 + $0x10] sm:$0xff]
        %v197 = vld [vmem:[%s1 + $0x18] sm:$0xff]
        %v198 = vld [vmem:[%s1 + $0x20] sm:$0xff]
        %v199 = vld [vmem:[%s1 + $0x28] sm:$0xff]
        %v200 = vld [vmem:[%s1 + $0x30] sm:$0xff]
        %v201 = vld [vmem:[%s1 + $0x38] sm:$0xff]
        %v202 = vld [vmem:[%s1 + $0x40] sm:$0xff]
        %v203 = vld [vmem:[%s1 + $0x48] sm:$0xff]
        %v204 = vld [vmem:[%s1 + $0x50] sm:$0xff]
        %v205 = vld [vmem:[%s1 + $0x58] sm:$0xff]
        %v206 = vld [vmem:[%s1 + $0x60] sm:$0xff]
        %v207 = vld [vmem:[%s1 + $0x68] sm:$0xff]
        %v208 = vld [vmem:[%s1 + $0x70] sm:$0xff]
        %v209 = vld [vmem:[%s1 + $0x78] sm:$0xff]
        %v210 = vld [vmem:[%s1 + $0x80] sm:$0xff]
        %v211 = vld [vmem:[%s1 + $0x88] sm:$0xff]
        %v212 = vld [vmem:[%s1 + $0x90] sm:$0xff]
        %v213 = vld [vmem:[%s1 + $0x98] sm:$0xff]
        %v214 = vld [vmem:[%s1 + $0xa0] sm:$0xff]
        %v215 = vld [vmem:[%s1 + $0xa8] sm:$0xff]
        %v216 = vld [vmem:[%s1 + $0xb0] sm:$0xff]
        %v217 = vld [vmem:[%s1 + $0xb8] sm:$0xff]
        %v218 = vld [vmem:[%s1 + $0xc0] sm:$0xff]
        %v219 = vld [vmem:[%s1 + $0xc8] sm:$0xff]
        %v220 = vld [vmem:[%s1 + $0xd0] sm:$0xff]
        %v221 = vld [vmem:[%s1 + $0xd8] sm:$0xff]
        %v222 = vld [vmem:[%s1 + $0xe0] sm:$0xff]
        %v223 = vld [vmem:[%s1 + $0xe8] sm:$0xff]
        %v224 = vld [vmem:[%s1 + $0xf0] sm:$0xff]
        %v225 = vld [vmem:[%s1 + $0xf8] sm:$0xff]
        %v226 = vld [vmem:[%s1 + $0x100] sm:$0xff]
        %v227 = vld [vmem:[%s1 + $0x108] sm:$0xff]
        %v228 = vld [vmem:[%s1 + $0x110] sm:$0xff]
        %v229 = vld [vmem:[%s1 + $0x118] sm:$0xff]
        %v230 = vld [vmem:[%s1 + $0x120] sm:$0xff]
        %v231 = vld [vmem:[%s1 + $0x128] sm:$0xff]
        %v232 = vld [vmem:[%s1 + $0x130] sm:$0xff]
        %v233 = vld [vmem:[%s1 + $0x138] sm:$0xff]
        %v234 = vld [vmem:[%s1 + $0x140] sm:$0xff]
        %v235 = vld [vmem:[%s1 + $0x148] sm:$0xff]
        %v236 = vld [vmem:[%s1 + $0x150] sm:$0xff]
        %v237 = vld [vmem:[%s1 + $0x158] sm:$0xff]
        %v238 = vld [vmem:[%s1 + $0x160] sm:$0xff]
        %v239 = vld [vmem:[%s1 + $0x168] sm:$0xff]
        %v240 = vld [vmem:[%s1 + $0x170] sm:$0xff]
        %v241 = vld [vmem:[%s1 + $0x178] sm:$0xff]
        %vm242 = vcmask 261120
        %v244 = vsel %vm242, %v193, 0
        %246 = vmatprep.subr.mxu0 %v195
        %247 = vmatpush1.msra.mxu0 %v194
        %248 = vmatprep.subr.mxu0 %v207
        %249 = vmatpush1.msra.mxu0 %v206
        %250 = vmatprep.subr.mxu0 %v219
        %251 = vmatpush1.msra.mxu0 %v218
        %252 = vmatprep.subr.mxu0 %v231
        %253 = vmatpush1.msra.mxu0 %v230
        %254 = vmatprep.subr.mxu0 0.0
        %255 = vmatpush1.msra.mxu0 0.0
        %256 = vmatprep.subr.mxu0 0.0
        %257 = vmatpush1.msra.mxu0 0.0
        %258 = vmatprep.subr.mxu0 0.0
        %259 = vmatpush1.msra.mxu0 0.0
        %260 = vmatprep.subr.mxu0 0.0
        %261 = vmatpush1.msra.mxu0 0.0
        %262 = vmatprep.subr.mxu0 0.0
        %263 = vmatpush1.msra.mxu0 0.0
        %264 = vmatprep.subr.mxu0 0.0
        %265 = vmatpush1.msra.mxu0 0.0
        %266 = vmatprep.subr.mxu0 0.0
        %267 = vmatpush1.msra.mxu0 0.0
        %268 = vmatprep.subr.mxu0 0.0
        %269 = vmatpush1.msra.mxu0 0.0
        %270 = vmatprep.subr.mxu0 0.0
        %271 = vmatpush1.msra.mxu0 0.0
        %272 = vmatprep.subr.mxu0 0.0
        %273 = vmatpush1.msra.mxu0 0.0
        %274 = vmatprep.subr.mxu0 0.0
        %275 = vmatpush1.msra.mxu0 0.0
        %276 = vmatprep.subr.mxu0 0.0
        %277 = vmatpush1.msra.mxu0 0.0
        %278 = vmatprep.subr.mxu0 0.0
        %279 = vmatpush1.msra.mxu0 0.0
        %280 = vmatprep.subr.mxu0 0.0
        %281 = vmatpush1.msra.mxu0 0.0
        %282 = vmatprep.subr.mxu0 0.0
        %283 = vmatpush1.msra.mxu0 0.0
        %284 = vmatprep.subr.mxu0 0.0
        %285 = vmatpush1.msra.mxu0 0.0
        %286 = vmatprep.subr.mxu0 0.0
        %287 = vmatpush1.msra.mxu0 0.0
        %288 = vmatprep.subr.mxu0 0.0
        %289 = vmatpush1.msra.mxu0 0.0
        %290 = vmatprep.subr.mxu0 0.0
        %291 = vmatpush1.msra.mxu0 0.0
        %292 = vmatprep.subr.mxu0 0.0
        %293 = vmatpush1.msra.mxu0 0.0
        %294 = vmatprep.subr.mxu0 0.0
        %295 = vmatpush1.msra.mxu0 0.0
        %296 = vmatprep.subr.mxu0 0.0
        %297 = vmatpush1.msra.mxu0 0.0
        %298 = vmatprep.subr.mxu0 0.0
        %299 = vmatpush1.msra.mxu0 0.0
        %300 = vmatprep.subr.mxu0 0.0
        %301 = vmatpush1.msra.mxu0 0.0
        %302 = vmatprep.subr.mxu0 0.0
        %303 = vmatpush1.msra.mxu0 0.0
        %304 = vmatprep.subr.mxu0 0.0
        %305 = vmatpush1.msra.mxu0 0.0
        %306 = vmatprep.subr.mxu0 0.0
        %307 = vmatpush1.msra.mxu0 0.0
        %308 = vmatprep.subr.mxu0 0.0
        %309 = vmatpush1.msra.mxu0 0.0
        %310 = vmatprep.mubr.f32.mxu0 0.0
        %311 = vmatmul.mubr.f32.gmra.mrb[0].mxu0 %v244
        %v312 = vpop.f32.mrb[0].mxu0
        %v313 = vadd.f32 0.0, %v312
        %v314 = vpop.f32.mrb[0].mxu0
        %v315 = vadd.f32 0.0, %v314
        %316 = vdwg.mxu0
        %317 = vmatprep.subr.mxu0 %v197
        %318 = vmatpush1.msra.mxu0 %v196
        %319 = vmatprep.subr.mxu0 %v209
        %320 = vmatpush1.msra.mxu0 %v208
        %321 = vmatprep.subr.mxu0 %v221
        %322 = vmatpush1.msra.mxu0 %v220
        %323 = vmatprep.subr.mxu0 %v233
        %324 = vmatpush1.msra.mxu0 %v232
        %325 = vmatprep.subr.mxu0 0.0
        %326 = vmatpush1.msra.mxu0 0.0
        %327 = vmatprep.subr.mxu0 0.0
        %328 = vmatpush1.msra.mxu0 0.0
        %329 = vmatprep.subr.mxu0 0.0
        %330 = vmatpush1.msra.mxu0 0.0
        %331 = vmatprep.subr.mxu0 0.0
        %332 = vmatpush1.msra.mxu0 0.0
        %333 = vmatprep.subr.mxu0 0.0
        %334 = vmatpush1.msra.mxu0 0.0
        %335 = vmatprep.subr.mxu0 0.0
        %336 = vmatpush1.msra.mxu0 0.0
        %337 = vmatprep.subr.mxu0 0.0
        %338 = vmatpush1.msra.mxu0 0.0
        %339 = vmatprep.subr.mxu0 0.0
        %340 = vmatpush1.msra.mxu0 0.0
        %341 = vmatprep.subr.mxu0 0.0
        %342 = vmatpush1.msra.mxu0 0.0
        %343 = vmatprep.subr.mxu0 0.0
        %344 = vmatpush1.msra.mxu0 0.0
        %345 = vmatprep.subr.mxu0 0.0
        %346 = vmatpush1.msra.mxu0 0.0
        %347 = vmatprep.subr.mxu0 0.0
        %348 = vmatpush1.msra.mxu0 0.0
        %349 = vmatprep.subr.mxu0 0.0
        %350 = vmatpush1.msra.mxu0 0.0
        %351 = vmatprep.subr.mxu0 0.0
        %352 = vmatpush1.msra.mxu0 0.0
        %353 = vmatprep.subr.mxu0 0.0
        %354 = vmatpush1.msra.mxu0 0.0
        %355 = vmatprep.subr.mxu0 0.0
        %356 = vmatpush1.msra.mxu0 0.0
        %357 = vmatprep.subr.mxu0 0.0
        %358 = vmatpush1.msra.mxu0 0.0
        %359 = vmatprep.subr.mxu0 0.0
        %360 = vmatpush1.msra.mxu0 0.0
        %361 = vmatprep.subr.mxu0 0.0
        %362 = vmatpush1.msra.mxu0 0.0
        %363 = vmatprep.subr.mxu0 0.0
        %364 = vmatpush1.msra.mxu0 0.0
        %365 = vmatprep.subr.mxu0 0.0
        %366 = vmatpush1.msra.mxu0 0.0
        %367 = vmatprep.subr.mxu0 0.0
        %368 = vmatpush1.msra.mxu0 0.0
        %369 = vmatprep.subr.mxu0 0.0
        %370 = vmatpush1.msra.mxu0 0.0
        %371 = vmatprep.subr.mxu0 0.0
        %372 = vmatpush1.msra.mxu0 0.0
        %373 = vmatprep.subr.mxu0 0.0
        %374 = vmatpush1.msra.mxu0 0.0
        %375 = vmatprep.subr.mxu0 0.0
        %376 = vmatpush1.msra.mxu0 0.0
        %377 = vmatprep.subr.mxu0 0.0
        %378 = vmatpush1.msra.mxu0 0.0
        %379 = vmatprep.subr.mxu0 0.0
        %380 = vmatpush1.msra.mxu0 0.0
        %381 = vmatprep.mubr.f32.mxu0 0.0
        %382 = vmatmul.mubr.f32.gmra.mrb[0].mxu0 %v244
        %v383 = vpop.f32.mrb[0].mxu0
        %v384 = vadd.f32 0.0, %v383
        %v385 = vpop.f32.mrb[0].mxu0
        %v386 = vadd.f32 0.0, %v385
        %387 = vdwg.mxu0
        %388 = vmatprep.subr.mxu0 %v199
        %389 = vmatpush1.msra.mxu0 %v198
        %390 = vmatprep.subr.mxu0 %v211
        %391 = vmatpush1.msra.mxu0 %v210
        %392 = vmatprep.subr.mxu0 %v223
        %393 = vmatpush1.msra.mxu0 %v222
        %394 = vmatprep.subr.mxu0 %v235
        %395 = vmatpush1.msra.mxu0 %v234
        %396 = vmatprep.subr.mxu0 0.0
        %397 = vmatpush1.msra.mxu0 0.0
        %398 = vmatprep.subr.mxu0 0.0
        %399 = vmatpush1.msra.mxu0 0.0
        %400 = vmatprep.subr.mxu0 0.0
        %401 = vmatpush1.msra.mxu0 0.0
        %402 = vmatprep.subr.mxu0 0.0
        %403 = vmatpush1.msra.mxu0 0.0
        %404 = vmatprep.subr.mxu0 0.0
        %405 = vmatpush1.msra.mxu0 0.0
        %406 = vmatprep.subr.mxu0 0.0
        %407 = vmatpush1.msra.mxu0 0.0
        %408 = vmatprep.subr.mxu0 0.0
        %409 = vmatpush1.msra.mxu0 0.0
        %410 = vmatprep.subr.mxu0 0.0
        %411 = vmatpush1.msra.mxu0 0.0
        %412 = vmatprep.subr.mxu0 0.0
        %413 = vmatpush1.msra.mxu0 0.0
        %414 = vmatprep.subr.mxu0 0.0
        %415 = vmatpush1.msra.mxu0 0.0
        %416 = vmatprep.subr.mxu0 0.0
        %417 = vmatpush1.msra.mxu0 0.0
        %418 = vmatprep.subr.mxu0 0.0
        %419 = vmatpush1.msra.mxu0 0.0
        %420 = vmatprep.subr.mxu0 0.0
        %421 = vmatpush1.msra.mxu0 0.0
        %422 = vmatprep.subr.mxu0 0.0
        %423 = vmatpush1.msra.mxu0 0.0
        %424 = vmatprep.subr.mxu0 0.0
        %425 = vmatpush1.msra.mxu0 0.0
        %426 = vmatprep.subr.mxu0 0.0
        %427 = vmatpush1.msra.mxu0 0.0
        %428 = vmatprep.subr.mxu0 0.0
        %429 = vmatpush1.msra.mxu0 0.0
        %430 = vmatprep.subr.mxu0 0.0
        %431 = vmatpush1.msra.mxu0 0.0
        %432 = vmatprep.subr.mxu0 0.0
        %433 = vmatpush1.msra.mxu0 0.0
        %434 = vmatprep.subr.mxu0 0.0
        %435 = vmatpush1.msra.mxu0 0.0
        %436 = vmatprep.subr.mxu0 0.0
        %437 = vmatpush1.msra.mxu0 0.0
        %438 = vmatprep.subr.mxu0 0.0
        %439 = vmatpush1.msra.mxu0 0.0
        %440 = vmatprep.subr.mxu0 0.0
        %441 = vmatpush1.msra.mxu0 0.0
        %442 = vmatprep.subr.mxu0 0.0
        %443 = vmatpush1.msra.mxu0 0.0
        %444 = vmatprep.subr.mxu0 0.0
        %445 = vmatpush1.msra.mxu0 0.0
        %446 = vmatprep.subr.mxu0 0.0
        %447 = vmatpush1.msra.mxu0 0.0
        %448 = vmatprep.subr.mxu0 0.0
        %449 = vmatpush1.msra.mxu0 0.0
        %450 = vmatprep.subr.mxu0 0.0
        %451 = vmatpush1.msra.mxu0 0.0
        %452 = vmatprep.mubr.f32.mxu0 0.0
        %453 = vmatmul.mubr.f32.gmra.mrb[0].mxu0 %v244
        %v454 = vpop.f32.mrb[0].mxu0
        %v455 = vadd.f32 0.0, %v454
        %v456 = vpop.f32.mrb[0].mxu0
        %v457 = vadd.f32 0.0, %v456
        %458 = vdwg.mxu0
        %459 = vmatprep.subr.mxu0 %v201
        %460 = vmatpush1.msra.mxu0 %v200
        %461 = vmatprep.subr.mxu0 %v213
        %462 = vmatpush1.msra.mxu0 %v212
        %463 = vmatprep.subr.mxu0 %v225
        %464 = vmatpush1.msra.mxu0 %v224
        %465 = vmatprep.subr.mxu0 %v237
        %466 = vmatpush1.msra.mxu0 %v236
        %467 = vmatprep.subr.mxu0 0.0
        %468 = vmatpush1.msra.mxu0 0.0
        %469 = vmatprep.subr.mxu0 0.0
        %470 = vmatpush1.msra.mxu0 0.0
        %471 = vmatprep.subr.mxu0 0.0
        %472 = vmatpush1.msra.mxu0 0.0
        %473 = vmatprep.subr.mxu0 0.0
        %474 = vmatpush1.msra.mxu0 0.0
        %475 = vmatprep.subr.mxu0 0.0
        %476 = vmatpush1.msra.mxu0 0.0
        %477 = vmatprep.subr.mxu0 0.0
        %478 = vmatpush1.msra.mxu0 0.0
        %479 = vmatprep.subr.mxu0 0.0
        %480 = vmatpush1.msra.mxu0 0.0
        %481 = vmatprep.subr.mxu0 0.0
        %482 = vmatpush1.msra.mxu0 0.0
        %483 = vmatprep.subr.mxu0 0.0
        %484 = vmatpush1.msra.mxu0 0.0
        %485 = vmatprep.subr.mxu0 0.0
        %486 = vmatpush1.msra.mxu0 0.0
        %487 = vmatprep.subr.mxu0 0.0
        %488 = vmatpush1.msra.mxu0 0.0
        %489 = vmatprep.subr.mxu0 0.0
        %490 = vmatpush1.msra.mxu0 0.0
        %491 = vmatprep.subr.mxu0 0.0
        %492 = vmatpush1.msra.mxu0 0.0
        %493 = vmatprep.subr.mxu0 0.0
        %494 = vmatpush1.msra.mxu0 0.0
        %495 = vmatprep.subr.mxu0 0.0
        %496 = vmatpush1.msra.mxu0 0.0
        %497 = vmatprep.subr.mxu0 0.0
        %498 = vmatpush1.msra.mxu0 0.0
        %499 = vmatprep.subr.mxu0 0.0
        %500 = vmatpush1.msra.mxu0 0.0
        %501 = vmatprep.subr.mxu0 0.0
        %502 = vmatpush1.msra.mxu0 0.0
        %503 = vmatprep.subr.mxu0 0.0
        %504 = vmatpush1.msra.mxu0 0.0
        %505 = vmatprep.subr.mxu0 0.0
        %506 = vmatpush1.msra.mxu0 0.0
        %507 = vmatprep.subr.mxu0 0.0
        %508 = vmatpush1.msra.mxu0 0.0
        %509 = vmatprep.subr.mxu0 0.0
        %510 = vmatpush1.msra.mxu0 0.0
        %511 = vmatprep.subr.mxu0 0.0
        %512 = vmatpush1.msra.mxu0 0.0
        %513 = vmatprep.subr.mxu0 0.0
        %514 = vmatpush1.msra.mxu0 0.0
        %515 = vmatprep.subr.mxu0 0.0
        %516 = vmatpush1.msra.mxu0 0.0
        %517 = vmatprep.subr.mxu0 0.0
        %518 = vmatpush1.msra.mxu0 0.0
        %519 = vmatprep.subr.mxu0 0.0
        %520 = vmatpush1.msra.mxu0 0.0
        %521 = vmatprep.subr.mxu0 0.0
        %522 = vmatpush1.msra.mxu0 0.0
        %523 = vmatprep.mubr.f32.mxu0 0.0
        %524 = vmatmul.mubr.f32.gmra.mrb[0].mxu0 %v244
        %v525 = vpop.f32.mrb[0].mxu0
        %v526 = vadd.f32 0.0, %v525
        %v527 = vpop.f32.mrb[0].mxu0
        %v528 = vadd.f32 0.0, %v527
        %529 = vdwg.mxu0
        %530 = vmatprep.subr.mxu0 %v203
        %531 = vmatpush1.msra.mxu0 %v202
        %532 = vmatprep.subr.mxu0 %v215
        %533 = vmatpush1.msra.mxu0 %v214
        %534 = vmatprep.subr.mxu0 %v227
        %535 = vmatpush1.msra.mxu0 %v226
        %536 = vmatprep.subr.mxu0 %v239
        %537 = vmatpush1.msra.mxu0 %v238
        %538 = vmatprep.subr.mxu0 0.0
        %539 = vmatpush1.msra.mxu0 0.0
        %540 = vmatprep.subr.mxu0 0.0
        %541 = vmatpush1.msra.mxu0 0.0
        %542 = vmatprep.subr.mxu0 0.0
        %543 = vmatpush1.msra.mxu0 0.0
        %544 = vmatprep.subr.mxu0 0.0
        %545 = vmatpush1.msra.mxu0 0.0
        %546 = vmatprep.subr.mxu0 0.0
        %547 = vmatpush1.msra.mxu0 0.0
        %548 = vmatprep.subr.mxu0 0.0
        %549 = vmatpush1.msra.mxu0 0.0
        %550 = vmatprep.subr.mxu0 0.0
        %551 = vmatpush1.msra.mxu0 0.0
        %552 = vmatprep.subr.mxu0 0.0
        %553 = vmatpush1.msra.mxu0 0.0
        %554 = vmatprep.subr.mxu0 0.0
        %555 = vmatpush1.msra.mxu0 0.0
        %556 = vmatprep.subr.mxu0 0.0
        %557 = vmatpush1.msra.mxu0 0.0
        %558 = vmatprep.subr.mxu0 0.0
        %559 = vmatpush1.msra.mxu0 0.0
        %560 = vmatprep.subr.mxu0 0.0
        %561 = vmatpush1.msra.mxu0 0.0
        %562 = vmatprep.subr.mxu0 0.0
        %563 = vmatpush1.msra.mxu0 0.0
        %564 = vmatprep.subr.mxu0 0.0
        %565 = vmatpush1.msra.mxu0 0.0
        %566 = vmatprep.subr.mxu0 0.0
        %567 = vmatpush1.msra.mxu0 0.0
        %568 = vmatprep.subr.mxu0 0.0
        %569 = vmatpush1.msra.mxu0 0.0
        %570 = vmatprep.subr.mxu0 0.0
        %571 = vmatpush1.msra.mxu0 0.0
        %572 = vmatprep.subr.mxu0 0.0
        %573 = vmatpush1.msra.mxu0 0.0
        %574 = vmatprep.subr.mxu0 0.0
        %575 = vmatpush1.msra.mxu0 0.0
        %576 = vmatprep.subr.mxu0 0.0
        %577 = vmatpush1.msra.mxu0 0.0
        %578 = vmatprep.subr.mxu0 0.0
        %579 = vmatpush1.msra.mxu0 0.0
        %580 = vmatprep.subr.mxu0 0.0
        %581 = vmatpush1.msra.mxu0 0.0
        %582 = vmatprep.subr.mxu0 0.0
        %583 = vmatpush1.msra.mxu0 0.0
        %584 = vmatprep.subr.mxu0 0.0
        %585 = vmatpush1.msra.mxu0 0.0
        %586 = vmatprep.subr.mxu0 0.0
        %587 = vmatpush1.msra.mxu0 0.0
        %588 = vmatprep.subr.mxu0 0.0
        %589 = vmatpush1.msra.mxu0 0.0
        %590 = vmatprep.subr.mxu0 0.0
        %591 = vmatpush1.msra.mxu0 0.0
        %592 = vmatprep.subr.mxu0 0.0
        %593 = vmatpush1.msra.mxu0 0.0
        %594 = vmatprep.mubr.f32.mxu0 0.0
        %595 = vmatmul.mubr.f32.gmra.mrb[0].mxu0 %v244
        %v596 = vpop.f32.mrb[0].mxu0
        %v597 = vadd.f32 0.0, %v596
        %v598 = vpop.f32.mrb[0].mxu0
        %v599 = vadd.f32 0.0, %v598
        %600 = vdwg.mxu0
        %601 = vmatprep.subr.mxu0 %v205
        %602 = vmatpush1.msra.mxu0 %v204
        %603 = vmatprep.subr.mxu0 %v217
        %604 = vmatpush1.msra.mxu0 %v216
        %605 = vmatprep.subr.mxu0 %v229
        %606 = vmatpush1.msra.mxu0 %v228
        %607 = vmatprep.subr.mxu0 %v241
        %608 = vmatpush1.msra.mxu0 %v240
        %609 = vmatprep.subr.mxu0 0.0
        %610 = vmatpush1.msra.mxu0 0.0
        %611 = vmatprep.subr.mxu0 0.0
        %612 = vmatpush1.msra.mxu0 0.0
        %613 = vmatprep.subr.mxu0 0.0
        %614 = vmatpush1.msra.mxu0 0.0
        %615 = vmatprep.subr.mxu0 0.0
        %616 = vmatpush1.msra.mxu0 0.0
        %617 = vmatprep.subr.mxu0 0.0
        %618 = vmatpush1.msra.mxu0 0.0
        %619 = vmatprep.subr.mxu0 0.0
        %620 = vmatpush1.msra.mxu0 0.0
        %621 = vmatprep.subr.mxu0 0.0
        %622 = vmatpush1.msra.mxu0 0.0
        %623 = vmatprep.subr.mxu0 0.0
        %624 = vmatpush1.msra.mxu0 0.0
        %625 = vmatprep.subr.mxu0 0.0
        %626 = vmatpush1.msra.mxu0 0.0
        %627 = vmatprep.subr.mxu0 0.0
        %628 = vmatpush1.msra.mxu0 0.0
        %629 = vmatprep.subr.mxu0 0.0
        %630 = vmatpush1.msra.mxu0 0.0
        %631 = vmatprep.subr.mxu0 0.0
        %632 = vmatpush1.msra.mxu0 0.0
        %633 = vmatprep.subr.mxu0 0.0
        %634 = vmatpush1.msra.mxu0 0.0
        %635 = vmatprep.subr.mxu0 0.0
        %636 = vmatpush1.msra.mxu0 0.0
        %637 = vmatprep.subr.mxu0 0.0
        %638 = vmatpush1.msra.mxu0 0.0
        %639 = vmatprep.subr.mxu0 0.0
        %640 = vmatpush1.msra.mxu0 0.0
        %641 = vmatprep.subr.mxu0 0.0
        %642 = vmatpush1.msra.mxu0 0.0
        %643 = vmatprep.subr.mxu0 0.0
        %644 = vmatpush1.msra.mxu0 0.0
        %645 = vmatprep.subr.mxu0 0.0
        %646 = vmatpush1.msra.mxu0 0.0
        %647 = vmatprep.subr.mxu0 0.0
        %648 = vmatpush1.msra.mxu0 0.0
        %649 = vmatprep.subr.mxu0 0.0
        %650 = vmatpush1.msra.mxu0 0.0
        %651 = vmatprep.subr.mxu0 0.0
        %652 = vmatpush1.msra.mxu0 0.0
        %653 = vmatprep.subr.mxu0 0.0
        %654 = vmatpush1.msra.mxu0 0.0
        %655 = vmatprep.subr.mxu0 0.0
        %656 = vmatpush1.msra.mxu0 0.0
        %657 = vmatprep.subr.mxu0 0.0
        %658 = vmatpush1.msra.mxu0 0.0
        %659 = vmatprep.subr.mxu0 0.0
        %660 = vmatpush1.msra.mxu0 0.0
        %661 = vmatprep.subr.mxu0 0.0
        %662 = vmatpush1.msra.mxu0 0.0
        %663 = vmatprep.subr.mxu0 0.0
        %664 = vmatpush1.msra.mxu0 0.0
        %665 = vmatprep.mubr.f32.mxu0 0.0
        %666 = vmatmul.mubr.f32.gmra.mrb[0].mxu0 %v244
        %v667 = vpop.f32.mrb[0].mxu0
        %v668 = vadd.f32 0.0, %v667
        %v669 = vpop.f32.mrb[0].mxu0
        %v670 = vadd.f32 0.0, %v669
        %671 = vdwg.mxu0
        %v672 = vmul.f32 %v313, 0.125
        %v673 = vmul.f32 %v315, 0.125
        %v674 = vmul.f32 %v384, 0.125
        %v675 = vmul.f32 %v386, 0.125
        %vm676 = vcmask 523264
        %v678 = vsel %vm676, %v672, 0
        %v681 = vsel %vm676, %v455, 0
        %683 = vmatprep.subr.mxu0 0.0
        %684 = vmatpush1.xpose.msra.mxu0 %v681
        %685 = vmatprep.subr.mxu0 0.0
        %686 = vmatpush1.xpose.msra.mxu0 0.0
        %687 = vmatprep.subr.mxu0 0.0
        %688 = vmatpush1.xpose.msra.mxu0 0.0
        %689 = vmatprep.subr.mxu0 0.0
        %690 = vmatpush1.xpose.msra.mxu0 0.0
        %691 = vmatprep.subr.mxu0 0.0
        %692 = vmatpush1.xpose.msra.mxu0 0.0
        %693 = vmatprep.subr.mxu0 0.0
        %694 = vmatpush1.xpose.msra.mxu0 0.0
        %695 = vmatprep.subr.mxu0 0.0
        %696 = vmatpush1.xpose.msra.mxu0 0.0
        %697 = vmatprep.subr.mxu0 0.0
        %698 = vmatpush1.xpose.msra.mxu0 0.0
        %699 = vmatprep.subr.mxu0 0.0
        %700 = vmatpush1.xpose.msra.mxu0 0.0
        %701 = vmatprep.subr.mxu0 0.0
        %702 = vmatpush1.xpose.msra.mxu0 0.0
        %703 = vmatprep.subr.mxu0 0.0
        %704 = vmatpush1.xpose.msra.mxu0 0.0
        %705 = vmatprep.subr.mxu0 0.0
        %706 = vmatpush1.xpose.msra.mxu0 0.0
        %707 = vmatprep.subr.mxu0 0.0
        %708 = vmatpush1.xpose.msra.mxu0 0.0
        %709 = vmatprep.subr.mxu0 0.0
        %710 = vmatpush1.xpose.msra.mxu0 0.0
        %711 = vmatprep.subr.mxu0 0.0
        %712 = vmatpush1.xpose.msra.mxu0 0.0
        %713 = vmatprep.subr.mxu0 0.0
        %714 = vmatpush1.xpose.msra.mxu0 0.0
        %715 = vmatprep.subr.mxu0 0.0
        %716 = vmatpush1.xpose.msra.mxu0 0.0
        %717 = vmatprep.subr.mxu0 0.0
        %718 = vmatpush1.xpose.msra.mxu0 0.0
        %719 = vmatprep.subr.mxu0 0.0
        %720 = vmatpush1.xpose.msra.mxu0 0.0
        %721 = vmatprep.subr.mxu0 0.0
        %722 = vmatpush1.xpose.msra.mxu0 0.0
        %723 = vmatprep.subr.mxu0 0.0
        %724 = vmatpush1.xpose.msra.mxu0 0.0
        %725 = vmatprep.subr.mxu0 0.0
        %726 = vmatpush1.xpose.msra.mxu0 0.0
        %727 = vmatprep.subr.mxu0 0.0
        %728 = vmatpush1.xpose.msra.mxu0 0.0
        %729 = vmatprep.subr.mxu0 0.0
        %730 = vmatpush1.xpose.msra.mxu0 0.0
        %731 = vmatprep.subr.mxu0 0.0
        %732 = vmatpush1.xpose.msra.mxu0 0.0
        %733 = vmatprep.subr.mxu0 0.0
        %734 = vmatpush1.xpose.msra.mxu0 0.0
        %735 = vmatprep.subr.mxu0 0.0
        %736 = vmatpush1.xpose.msra.mxu0 0.0
        %737 = vmatprep.subr.mxu0 0.0
        %738 = vmatpush1.xpose.msra.mxu0 0.0
        %739 = vmatprep.subr.mxu0 0.0
        %740 = vmatpush1.xpose.msra.mxu0 0.0
        %741 = vmatprep.subr.mxu0 0.0
        %742 = vmatpush1.xpose.msra.mxu0 0.0
        %743 = vmatprep.subr.mxu0 0.0
        %744 = vmatpush1.xpose.msra.mxu0 0.0
        %745 = vmatprep.subr.mxu0 0.0
        %746 = vmatpush1.xpose.msra.mxu0 0.0
        %747 = vmatprep.mubr.f32.mxu0 0.0
        %748 = vmatmul.mubr.f32.gmra.mrb[0].mxu0 %v678
        %v749 = vpop.f32.mrb[0].mxu0
        %v750 = vadd.f32 0.0, %v749
        %v751 = vpop.f32.mrb[0].mxu0
        %752 = vdwg.mxu0
        %vm753 = vcmask 64512
        %v754 = vsel %vm753, %v750, -inf
        %755 = vmax.xlane.f32.xlu0 %v754
        %v756 = vpop.xlane.xlu0 %755
        %v757 = vsub.f32 %v750, %v756
        %v758 = vmul.f32 %v757, 1.442695
        %v759 = vpow.pop %v758
        %v760 = vsel %vm753, %v759, 0.0
        %761 = vadd.xlane.f32.xlu0 %v760
        %v762 = vpop.xlane.xlu0 %761
        %v763 = vrcp.pop %v762
        %v764 = vmul.f32 %v759, %v763
        %v766 = vsel %vm753, %v764, 0
        %768 = vmatprep.subr.mxu0 0.0
        %769 = vmatpush1.msra.mxu0 %v597
        %770 = vmatprep.subr.mxu0 0.0
        %771 = vmatpush1.msra.mxu0 0.0
        %772 = vmatprep.subr.mxu0 0.0
        %773 = vmatpush1.msra.mxu0 0.0
        %774 = vmatprep.subr.mxu0 0.0
        %775 = vmatpush1.msra.mxu0 0.0
        %776 = vmatprep.subr.mxu0 0.0
        %777 = vmatpush1.msra.mxu0 0.0
        %778 = vmatprep.subr.mxu0 0.0
        %779 = vmatpush1.msra.mxu0 0.0
        %780 = vmatprep.subr.mxu0 0.0
        %781 = vmatpush1.msra.mxu0 0.0
        %782 = vmatprep.subr.mxu0 0.0
        %783 = vmatpush1.msra.mxu0 0.0
        %784 = vmatprep.subr.mxu0 0.0
        %785 = vmatpush1.msra.mxu0 0.0
        %786 = vmatprep.subr.mxu0 0.0
        %787 = vmatpush1.msra.mxu0 0.0
        %788 = vmatprep.subr.mxu0 0.0
        %789 = vmatpush1.msra.mxu0 0.0
        %790 = vmatprep.subr.mxu0 0.0
        %791 = vmatpush1.msra.mxu0 0.0
        %792 = vmatprep.subr.mxu0 0.0
        %793 = vmatpush1.msra.mxu0 0.0
        %794 = vmatprep.subr.mxu0 0.0
        %795 = vmatpush1.msra.mxu0 0.0
        %796 = vmatprep.subr.mxu0 0.0
        %797 = vmatpush1.msra.mxu0 0.0
        %798 = vmatprep.subr.mxu0 0.0
        %799 = vmatpush1.msra.mxu0 0.0
        %800 = vmatprep.subr.mxu0 0.0
        %801 = vmatpush1.msra.mxu0 0.0
        %802 = vmatprep.subr.mxu0 0.0
        %803 = vmatpush1.msra.mxu0 0.0
        %804 = vmatprep.subr.mxu0 0.0
        %805 = vmatpush1.msra.mxu0 0.0
        %806 = vmatprep.subr.mxu0 0.0
        %807 = vmatpush1.msra.mxu0 0.0
        %808 = vmatprep.subr.mxu0 0.0
        %809 = vmatpush1.msra.mxu0 0.0
        %810 = vmatprep.subr.mxu0 0.0
        %811 = vmatpush1.msra.mxu0 0.0
        %812 = vmatprep.subr.mxu0 0.0
        %813 = vmatpush1.msra.mxu0 0.0
        %814 = vmatprep.subr.mxu0 0.0
        %815 = vmatpush1.msra.mxu0 0.0
        %816 = vmatprep.subr.mxu0 0.0
        %817 = vmatpush1.msra.mxu0 0.0
        %818 = vmatprep.subr.mxu0 0.0
        %819 = vmatpush1.msra.mxu0 0.0
        %820 = vmatprep.subr.mxu0 0.0
        %821 = vmatpush1.msra.mxu0 0.0
        %822 = vmatprep.subr.mxu0 0.0
        %823 = vmatpush1.msra.mxu0 0.0
        %824 = vmatprep.subr.mxu0 0.0
        %825 = vmatpush1.msra.mxu0 0.0
        %826 = vmatprep.subr.mxu0 0.0
        %827 = vmatpush1.msra.mxu0 0.0
        %828 = vmatprep.subr.mxu0 0.0
        %829 = vmatpush1.msra.mxu0 0.0
        %830 = vmatprep.subr.mxu0 0.0
        %831 = vmatpush1.msra.mxu0 0.0
        %832 = vmatprep.mubr.f32.mxu0 0.0
        %833 = vmatmul.mubr.f32.gmra.mrb[0].mxu0 %v766
        %v834 = vpop.f32.mrb[0].mxu0
        %v835 = vadd.f32 0.0, %v834
        %v836 = vpop.f32.mrb[0].mxu0
        %837 = vdwg.mxu0
        %v838 = vld [vmem:[%s2] sm:$0xff]
        %v839 = vld [vmem:[%s2 + $0x8] sm:$0xff]
        %v840 = vld [vmem:[%s2 + $0x10] sm:$0xff]
        %v841 = vld [vmem:[%s2 + $0x18] sm:$0xff]
        %v842 = vld [vmem:[%s2 + $0x20] sm:$0xff]
        %v843 = vld [vmem:[%s2 + $0x28] sm:$0xff]
        %v844 = vld [vmem:[%s2 + $0x30] sm:$0xff]
        %v845 = vld [vmem:[%s2 + $0x38] sm:$0xff]
        %846 = vrot.lane.b32.xlu0 %v672, 64
        %v847 = vpop.permute.xlu0 %846
        %848 = vrot.lane.b32.xlu0 %v455, 64
        %v849 = vpop.permute.xlu0 %848
        %v850 = vsel %vm676, %v847, 0
        %v852 = vsel %vm676, %v849, 0
        %854 = vmatprep.subr.mxu0 0.0
        %855 = vmatpush1.xpose.msra.mxu0 %v852
        %856 = vmatprep.subr.mxu0 0.0
        %857 = vmatpush1.xpose.msra.mxu0 0.0
        %858 = vmatprep.subr.mxu0 0.0
        %859 = vmatpush1.xpose.msra.mxu0 0.0
        %860 = vmatprep.subr.mxu0 0.0
        %861 = vmatpush1.xpose.msra.mxu0 0.0
        %862 = vmatprep.subr.mxu0 0.0
        %863 = vmatpush1.xpose.msra.mxu0 0.0
        %864 = vmatprep.subr.mxu0 0.0
        %865 = vmatpush1.xpose.msra.mxu0 0.0
        %866 = vmatprep.subr.mxu0 0.0
        %867 = vmatpush1.xpose.msra.mxu0 0.0
        %868 = vmatprep.subr.mxu0 0.0
        %869 = vmatpush1.xpose.msra.mxu0 0.0
        %870 = vmatprep.subr.mxu0 0.0
        %871 = vmatpush1.xpose.msra.mxu0 0.0
        %872 = vmatprep.subr.mxu0 0.0
        %873 = vmatpush1.xpose.msra.mxu0 0.0
        %874 = vmatprep.subr.mxu0 0.0
        %875 = vmatpush1.xpose.msra.mxu0 0.0
        %876 = vmatprep.subr.mxu0 0.0
        %877 = vmatpush1.xpose.msra.mxu0 0.0
        %878 = vmatprep.subr.mxu0 0.0
        %879 = vmatpush1.xpose.msra.mxu0 0.0
        %880 = vmatprep.subr.mxu0 0.0
        %881 = vmatpush1.xpose.msra.mxu0 0.0
        %882 = vmatprep.subr.mxu0 0.0
        %883 = vmatpush1.xpose.msra.mxu0 0.0
        %884 = vmatprep.subr.mxu0 0.0
        %885 = vmatpush1.xpose.msra.mxu0 0.0
        %886 = vmatprep.subr.mxu0 0.0
        %887 = vmatpush1.xpose.msra.mxu0 0.0
        %888 = vmatprep.subr.mxu0 0.0
        %889 = vmatpush1.xpose.msra.mxu0 0.0
        %890 = vmatprep.subr.mxu0 0.0
        %891 = vmatpush1.xpose.msra.mxu0 0.0
        %892 = vmatprep.subr.mxu0 0.0
        %893 = vmatpush1.xpose.msra.mxu0 0.0
        %894 = vmatprep.subr.mxu0 0.0
        %895 = vmatpush1.xpose.msra.mxu0 0.0
        %896 = vmatprep.subr.mxu0 0.0
        %897 = vmatpush1.xpose.msra.mxu0 0.0
        %898 = vmatprep.subr.mxu0 0.0
        %899 = vmatpush1.xpose.msra.mxu0 0.0
        %900 = vmatprep.subr.mxu0 0.0
        %901 = vmatpush1.xpose.msra.mxu0 0.0
        %902 = vmatprep.subr.mxu0 0.0
        %903 = vmatpush1.xpose.msra.mxu0 0.0
        %904 = vmatprep.subr.mxu0 0.0
        %905 = vmatpush1.xpose.msra.mxu0 0.0
        %906 = vmatprep.subr.mxu0 0.0
        %907 = vmatpush1.xpose.msra.mxu0 0.0
        %908 = vmatprep.subr.mxu0 0.0
        %909 = vmatpush1.xpose.msra.mxu0 0.0
        %910 = vmatprep.subr.mxu0 0.0
        %911 = vmatpush1.xpose.msra.mxu0 0.0
        %912 = vmatprep.subr.mxu0 0.0
        %913 = vmatpush1.xpose.msra.mxu0 0.0
        %914 = vmatprep.subr.mxu0 0.0
        %915 = vmatpush1.xpose.msra.mxu0 0.0
        %916 = vmatprep.subr.mxu0 0.0
        %917 = vmatpush1.xpose.msra.mxu0 0.0
        %918 = vmatprep.mubr.f32.mxu0 0.0
        %919 = vmatmul.mubr.f32.gmra.mrb[0].mxu0 %v850
        %v920 = vpop.f32.mrb[0].mxu0
        %v921 = vadd.f32 0.0, %v920
        %v922 = vpop.f32.mrb[0].mxu0
        %923 = vdwg.mxu0
        %v924 = vsel %vm753, %v921, -inf
        %925 = vmax.xlane.f32.xlu0 %v924
        %v926 = vpop.xlane.xlu0 %925
        %v927 = vsub.f32 %v921, %v926
        %v928 = vmul.f32 %v927, 1.442695
        %v929 = vpow.pop %v928
        %v930 = vsel %vm753, %v929, 0.0
        %931 = vadd.xlane.f32.xlu0 %v930
        %v932 = vpop.xlane.xlu0 %931
        %v933 = vrcp.pop %v932
        %v934 = vmul.f32 %v929, %v933
        %936 = vrot.lane.b32.xlu0 %v597, 64
        %v937 = vpop.permute.xlu0 %936
        %v940 = vsel %vm753, %v934, 0
        %942 = vmatprep.subr.mxu0 0.0
        %943 = vmatpush1.msra.mxu0 %v937
        %944 = vmatprep.subr.mxu0 0.0
        %945 = vmatpush1.msra.mxu0 0.0
        %946 = vmatprep.subr.mxu0 0.0
        %947 = vmatpush1.msra.mxu0 0.0
        %948 = vmatprep.subr.mxu0 0.0
        %949 = vmatpush1.msra.mxu0 0.0
        %950 = vmatprep.subr.mxu0 0.0
        %951 = vmatpush1.msra.mxu0 0.0
        %952 = vmatprep.subr.mxu0 0.0
        %953 = vmatpush1.msra.mxu0 0.0
        %954 = vmatprep.subr.mxu0 0.0
        %955 = vmatpush1.msra.mxu0 0.0
        %956 = vmatprep.subr.mxu0 0.0
        %957 = vmatpush1.msra.mxu0 0.0
        %958 = vmatprep.subr.mxu0 0.0
        %959 = vmatpush1.msra.mxu0 0.0
        %960 = vmatprep.subr.mxu0 0.0
        %961 = vmatpush1.msra.mxu0 0.0
        %962 = vmatprep.subr.mxu0 0.0
        %963 = vmatpush1.msra.mxu0 0.0
        %964 = vmatprep.subr.mxu0 0.0
        %965 = vmatpush1.msra.mxu0 0.0
        %966 = vmatprep.subr.mxu0 0.0
        %967 = vmatpush1.msra.mxu0 0.0
        %968 = vmatprep.subr.mxu0 0.0
        %969 = vmatpush1.msra.mxu0 0.0
        %970 = vmatprep.subr.mxu0 0.0
        %971 = vmatpush1.msra.mxu0 0.0
        %972 = vmatprep.subr.mxu0 0.0
        %973 = vmatpush1.msra.mxu0 0.0
        %974 = vmatprep.subr.mxu0 0.0
        %975 = vmatpush1.msra.mxu0 0.0
        %976 = vmatprep.subr.mxu0 0.0
        %977 = vmatpush1.msra.mxu0 0.0
        %978 = vmatprep.subr.mxu0 0.0
        %979 = vmatpush1.msra.mxu0 0.0
        %980 = vmatprep.subr.mxu0 0.0
        %981 = vmatpush1.msra.mxu0 0.0
        %982 = vmatprep.subr.mxu0 0.0
        %983 = vmatpush1.msra.mxu0 0.0
        %984 = vmatprep.subr.mxu0 0.0
        %985 = vmatpush1.msra.mxu0 0.0
        %986 = vmatprep.subr.mxu0 0.0
        %987 = vmatpush1.msra.mxu0 0.0
        %988 = vmatprep.subr.mxu0 0.0
        %989 = vmatpush1.msra.mxu0 0.0
        %990 = vmatprep.subr.mxu0 0.0
        %991 = vmatpush1.msra.mxu0 0.0
        %992 = vmatprep.subr.mxu0 0.0
        %993 = vmatpush1.msra.mxu0 0.0
        %994 = vmatprep.subr.mxu0 0.0
        %995 = vmatpush1.msra.mxu0 0.0
        %996 = vmatprep.subr.mxu0 0.0
        %997 = vmatpush1.msra.mxu0 0.0
        %998 = vmatprep.subr.mxu0 0.0
        %999 = vmatpush1.msra.mxu0 0.0
        %1000 = vmatprep.subr.mxu0 0.0
        %1001 = vmatpush1.msra.mxu0 0.0
        %1002 = vmatprep.subr.mxu0 0.0
        %1003 = vmatpush1.msra.mxu0 0.0
        %1004 = vmatprep.subr.mxu0 0.0
        %1005 = vmatpush1.msra.mxu0 0.0
        %1006 = vmatprep.mubr.f32.mxu0 0.0
        %1007 = vmatmul.mubr.f32.gmra.mrb[0].mxu0 %v940
        %v1008 = vpop.f32.mrb[0].mxu0
        %v1009 = vadd.f32 0.0, %v1008
        %v1010 = vpop.f32.mrb[0].mxu0
        %1011 = vdwg.mxu0
        %v1012 = vld [vmem:[%s2 + $0x40] sm:$0xff]
        %v1013 = vld [vmem:[%s2 + $0x48] sm:$0xff]
        %v1014 = vld [vmem:[%s2 + $0x50] sm:$0xff]
        %v1015 = vld [vmem:[%s2 + $0x58] sm:$0xff]
        %v1016 = vld [vmem:[%s2 + $0x60] sm:$0xff]
        %v1017 = vld [vmem:[%s2 + $0x68] sm:$0xff]
        %v1018 = vld [vmem:[%s2 + $0x70] sm:$0xff]
        %v1019 = vld [vmem:[%s2 + $0x78] sm:$0xff]
        %v1021 = vsel %vm676, %v1009, 0
        %1023 = vmatprep.subr.mxu0 0.0
        %1024 = vmatpush1.msra.mxu0 %v1012
        %1025 = vmatprep.subr.mxu0 0.0
        %1026 = vmatpush1.msra.mxu0 %v1013
        %1027 = vmatprep.subr.mxu0 0.0
        %1028 = vmatpush1.msra.mxu0 %v1014
        %1029 = vmatprep.subr.mxu0 0.0
        %1030 = vmatpush1.msra.mxu0 %v1015
        %1031 = vmatprep.subr.mxu0 0.0
        %1032 = vmatpush1.msra.mxu0 %v1016
        %1033 = vmatprep.subr.mxu0 0.0
        %1034 = vmatpush1.msra.mxu0 %v1017
        %1035 = vmatprep.subr.mxu0 0.0
        %1036 = vmatpush1.msra.mxu0 %v1018
        %1037 = vmatprep.subr.mxu0 0.0
        %1038 = vmatpush1.msra.mxu0 %v1019
        %1039 = vmatprep.subr.mxu0 0.0
        %1040 = vmatpush1.msra.mxu0 0.0
        %1041 = vmatprep.subr.mxu0 0.0
        %1042 = vmatpush1.msra.mxu0 0.0
        %1043 = vmatprep.subr.mxu0 0.0
        %1044 = vmatpush1.msra.mxu0 0.0
        %1045 = vmatprep.subr.mxu0 0.0
        %1046 = vmatpush1.msra.mxu0 0.0
        %1047 = vmatprep.subr.mxu0 0.0
        %1048 = vmatpush1.msra.mxu0 0.0
        %1049 = vmatprep.subr.mxu0 0.0
        %1050 = vmatpush1.msra.mxu0 0.0
        %1051 = vmatprep.subr.mxu0 0.0
        %1052 = vmatpush1.msra.mxu0 0.0
        %1053 = vmatprep.subr.mxu0 0.0
        %1054 = vmatpush1.msra.mxu0 0.0
        %1055 = vmatprep.subr.mxu0 0.0
        %1056 = vmatpush1.msra.mxu0 0.0
        %1057 = vmatprep.subr.mxu0 0.0
        %1058 = vmatpush1.msra.mxu0 0.0
        %1059 = vmatprep.subr.mxu0 0.0
        %1060 = vmatpush1.msra.mxu0 0.0
        %1061 = vmatprep.subr.mxu0 0.0
        %1062 = vmatpush1.msra.mxu0 0.0
        %1063 = vmatprep.subr.mxu0 0.0
        %1064 = vmatpush1.msra.mxu0 0.0
        %1065 = vmatprep.subr.mxu0 0.0
        %1066 = vmatpush1.msra.mxu0 0.0
        %1067 = vmatprep.subr.mxu0 0.0
        %1068 = vmatpush1.msra.mxu0 0.0
        %1069 = vmatprep.subr.mxu0 0.0
        %1070 = vmatpush1.msra.mxu0 0.0
        %1071 = vmatprep.subr.mxu0 0.0
        %1072 = vmatpush1.msra.mxu0 0.0
        %1073 = vmatprep.subr.mxu0 0.0
        %1074 = vmatpush1.msra.mxu0 0.0
        %1075 = vmatprep.subr.mxu0 0.0
        %1076 = vmatpush1.msra.mxu0 0.0
        %1077 = vmatprep.subr.mxu0 0.0
        %1078 = vmatpush1.msra.mxu0 0.0
        %1079 = vmatprep.subr.mxu0 0.0
        %1080 = vmatpush1.msra.mxu0 0.0
        %1081 = vmatprep.subr.mxu0 0.0
        %1082 = vmatpush1.msra.mxu0 0.0
        %1083 = vmatprep.subr.mxu0 0.0
        %1084 = vmatpush1.msra.mxu0 0.0
        %1085 = vmatprep.subr.mxu0 0.0
        %1086 = vmatpush1.msra.mxu0 0.0
        %1087 = vmatprep.mubr.f32.mxu0 0.0
        %1088 = vmatmul.mubr.f32.gmra.mrb[0].mxu0 %v1021
        %v1089 = vpop.f32.mrb[0].mxu0
        %v1090 = vadd.f32 0.0, %v1089
        %v1091 = vpop.f32.mrb[0].mxu0
        %1092 = vdwg.mxu0
        %v1094 = vsel %vm676, %v835, 0
        %1096 = vmatprep.subr.mxu0 0.0
        %1097 = vmatpush1.msra.mxu0 %v838
        %1098 = vmatprep.subr.mxu0 0.0
        %1099 = vmatpush1.msra.mxu0 %v839
        %1100 = vmatprep.subr.mxu0 0.0
        %1101 = vmatpush1.msra.mxu0 %v840
        %1102 = vmatprep.subr.mxu0 0.0
        %1103 = vmatpush1.msra.mxu0 %v841
        %1104 = vmatprep.subr.mxu0 0.0
        %1105 = vmatpush1.msra.mxu0 %v842
        %1106 = vmatprep.subr.mxu0 0.0
        %1107 = vmatpush1.msra.mxu0 %v843
        %1108 = vmatprep.subr.mxu0 0.0
        %1109 = vmatpush1.msra.mxu0 %v844
        %1110 = vmatprep.subr.mxu0 0.0
        %1111 = vmatpush1.msra.mxu0 %v845
        %1112 = vmatprep.subr.mxu0 0.0
        %1113 = vmatpush1.msra.mxu0 0.0
        %1114 = vmatprep.subr.mxu0 0.0
        %1115 = vmatpush1.msra.mxu0 0.0
        %1116 = vmatprep.subr.mxu0 0.0
        %1117 = vmatpush1.msra.mxu0 0.0
        %1118 = vmatprep.subr.mxu0 0.0
        %1119 = vmatpush1.msra.mxu0 0.0
        %1120 = vmatprep.subr.mxu0 0.0
        %1121 = vmatpush1.msra.mxu0 0.0
        %1122 = vmatprep.subr.mxu0 0.0
        %1123 = vmatpush1.msra.mxu0 0.0
        %1124 = vmatprep.subr.mxu0 0.0
        %1125 = vmatpush1.msra.mxu0 0.0
        %1126 = vmatprep.subr.mxu0 0.0
        %1127 = vmatpush1.msra.mxu0 0.0
        %1128 = vmatprep.subr.mxu0 0.0
        %1129 = vmatpush1.msra.mxu0 0.0
        %1130 = vmatprep.subr.mxu0 0.0
        %1131 = vmatpush1.msra.mxu0 0.0
        %1132 = vmatprep.subr.mxu0 0.0
        %1133 = vmatpush1.msra.mxu0 0.0
        %1134 = vmatprep.subr.mxu0 0.0
        %1135 = vmatpush1.msra.mxu0 0.0
        %1136 = vmatprep.subr.mxu0 0.0
        %1137 = vmatpush1.msra.mxu0 0.0
        %1138 = vmatprep.subr.mxu0 0.0
        %1139 = vmatpush1.msra.mxu0 0.0
        %1140 = vmatprep.subr.mxu0 0.0
        %1141 = vmatpush1.msra.mxu0 0.0
        %1142 = vmatprep.subr.mxu0 0.0
        %1143 = vmatpush1.msra.mxu0 0.0
        %1144 = vmatprep.subr.mxu0 0.0
        %1145 = vmatpush1.msra.mxu0 0.0
        %1146 = vmatprep.subr.mxu0 0.0
        %1147 = vmatpush1.msra.mxu0 0.0
        %1148 = vmatprep.subr.mxu0 0.0
        %1149 = vmatpush1.msra.mxu0 0.0
        %1150 = vmatprep.subr.mxu0 0.0
        %1151 = vmatpush1.msra.mxu0 0.0
        %1152 = vmatprep.subr.mxu0 0.0
        %1153 = vmatpush1.msra.mxu0 0.0
        %1154 = vmatprep.subr.mxu0 0.0
        %1155 = vmatpush1.msra.mxu0 0.0
        %1156 = vmatprep.subr.mxu0 0.0
        %1157 = vmatpush1.msra.mxu0 0.0
        %1158 = vmatprep.subr.mxu0 0.0
        %1159 = vmatpush1.msra.mxu0 0.0
        %1160 = vmatprep.mubr.f32.mxu0 0.0
        %1161 = vmatmul.mubr.f32.gmra.mrb[0].mxu0 %v1094
        %v1162 = vpop.f32.mrb[0].mxu0
        %v1163 = vadd.f32 %v1090, %v1162
        %v1164 = vpop.f32.mrb[0].mxu0
        %1165 = vdwg.mxu0
        %v1167 = vsel %vm676, %v673, 0
        %v1170 = vsel %vm676, %v457, 0
        %1172 = vmatprep.subr.mxu0 0.0
        %1173 = vmatpush1.xpose.msra.mxu0 %v1170
        %1174 = vmatprep.subr.mxu0 0.0
        %1175 = vmatpush1.xpose.msra.mxu0 0.0
        %1176 = vmatprep.subr.mxu0 0.0
        %1177 = vmatpush1.xpose.msra.mxu0 0.0
        %1178 = vmatprep.subr.mxu0 0.0
        %1179 = vmatpush1.xpose.msra.mxu0 0.0
        %1180 = vmatprep.subr.mxu0 0.0
        %1181 = vmatpush1.xpose.msra.mxu0 0.0
        %1182 = vmatprep.subr.mxu0 0.0
        %1183 = vmatpush1.xpose.msra.mxu0 0.0
        %1184 = vmatprep.subr.mxu0 0.0
        %1185 = vmatpush1.xpose.msra.mxu0 0.0
        %1186 = vmatprep.subr.mxu0 0.0
        %1187 = vmatpush1.xpose.msra.mxu0 0.0
        %1188 = vmatprep.subr.mxu0 0.0
        %1189 = vmatpush1.xpose.msra.mxu0 0.0
        %1190 = vmatprep.subr.mxu0 0.0
        %1191 = vmatpush1.xpose.msra.mxu0 0.0
        %1192 = vmatprep.subr.mxu0 0.0
        %1193 = vmatpush1.xpose.msra.mxu0 0.0
        %1194 = vmatprep.subr.mxu0 0.0
        %1195 = vmatpush1.xpose.msra.mxu0 0.0
        %1196 = vmatprep.subr.mxu0 0.0
        %1197 = vmatpush1.xpose.msra.mxu0 0.0
        %1198 = vmatprep.subr.mxu0 0.0
        %1199 = vmatpush1.xpose.msra.mxu0 0.0
        %1200 = vmatprep.subr.mxu0 0.0
        %1201 = vmatpush1.xpose.msra.mxu0 0.0
        %1202 = vmatprep.subr.mxu0 0.0
        %1203 = vmatpush1.xpose.msra.mxu0 0.0
        %1204 = vmatprep.subr.mxu0 0.0
        %1205 = vmatpush1.xpose.msra.mxu0 0.0
        %1206 = vmatprep.subr.mxu0 0.0
        %1207 = vmatpush1.xpose.msra.mxu0 0.0
        %1208 = vmatprep.subr.mxu0 0.0
        %1209 = vmatpush1.xpose.msra.mxu0 0.0
        %1210 = vmatprep.subr.mxu0 0.0
        %1211 = vmatpush1.xpose.msra.mxu0 0.0
        %1212 = vmatprep.subr.mxu0 0.0
        %1213 = vmatpush1.xpose.msra.mxu0 0.0
        %1214 = vmatprep.subr.mxu0 0.0
        %1215 = vmatpush1.xpose.msra.mxu0 0.0
        %1216 = vmatprep.subr.mxu0 0.0
        %1217 = vmatpush1.xpose.msra.mxu0 0.0
        %1218 = vmatprep.subr.mxu0 0.0
        %1219 = vmatpush1.xpose.msra.mxu0 0.0
        %1220 = vmatprep.subr.mxu0 0.0
        %1221 = vmatpush1.xpose.msra.mxu0 0.0
        %1222 = vmatprep.subr.mxu0 0.0
        %1223 = vmatpush1.xpose.msra.mxu0 0.0
        %1224 = vmatprep.subr.mxu0 0.0
        %1225 = vmatpush1.xpose.msra.mxu0 0.0
        %1226 = vmatprep.subr.mxu0 0.0
        %1227 = vmatpush1.xpose.msra.mxu0 0.0
        %1228 = vmatprep.subr.mxu0 0.0
        %1229 = vmatpush1.xpose.msra.mxu0 0.0
        %1230 = vmatprep.subr.mxu0 0.0
        %1231 = vmatpush1.xpose.msra.mxu0 0.0
        %1232 = vmatprep.subr.mxu0 0.0
        %1233 = vmatpush1.xpose.msra.mxu0 0.0
        %1234 = vmatprep.subr.mxu0 0.0
        %1235 = vmatpush1.xpose.msra.mxu0 0.0
        %1236 = vmatprep.mubr.f32.mxu0 0.0
        %1237 = vmatmul.mubr.f32.gmra.mrb[0].mxu0 %v1167
        %v1238 = vpop.f32.mrb[0].mxu0
        %v1239 = vadd.f32 0.0, %v1238
        %v1240 = vpop.f32.mrb[0].mxu0
        %1241 = vdwg.mxu0
        %v1242 = vsel %vm753, %v1239, -inf
        %1243 = vmax.xlane.f32.xlu0 %v1242
        %v1244 = vpop.xlane.xlu0 %1243
        %v1245 = vsub.f32 %v1239, %v1244
        %v1246 = vmul.f32 %v1245, 1.442695
        %v1247 = vpow.pop %v1246
        %v1248 = vsel %vm753, %v1247, 0.0
        %1249 = vadd.xlane.f32.xlu0 %v1248
        %v1250 = vpop.xlane.xlu0 %1249
        %v1251 = vrcp.pop %v1250
        %v1252 = vmul.f32 %v1247, %v1251
        %v1254 = vsel %vm753, %v1252, 0
        %1256 = vmatprep.subr.mxu0 0.0
        %1257 = vmatpush1.msra.mxu0 %v599
        %1258 = vmatprep.subr.mxu0 0.0
        %1259 = vmatpush1.msra.mxu0 0.0
        %1260 = vmatprep.subr.mxu0 0.0
        %1261 = vmatpush1.msra.mxu0 0.0
        %1262 = vmatprep.subr.mxu0 0.0
        %1263 = vmatpush1.msra.mxu0 0.0
        %1264 = vmatprep.subr.mxu0 0.0
        %1265 = vmatpush1.msra.mxu0 0.0
        %1266 = vmatprep.subr.mxu0 0.0
        %1267 = vmatpush1.msra.mxu0 0.0
        %1268 = vmatprep.subr.mxu0 0.0
        %1269 = vmatpush1.msra.mxu0 0.0
        %1270 = vmatprep.subr.mxu0 0.0
        %1271 = vmatpush1.msra.mxu0 0.0
        %1272 = vmatprep.subr.mxu0 0.0
        %1273 = vmatpush1.msra.mxu0 0.0
        %1274 = vmatprep.subr.mxu0 0.0
        %1275 = vmatpush1.msra.mxu0 0.0
        %1276 = vmatprep.subr.mxu0 0.0
        %1277 = vmatpush1.msra.mxu0 0.0
        %1278 = vmatprep.subr.mxu0 0.0
        %1279 = vmatpush1.msra.mxu0 0.0
        %1280 = vmatprep.subr.mxu0 0.0
        %1281 = vmatpush1.msra.mxu0 0.0
        %1282 = vmatprep.subr.mxu0 0.0
        %1283 = vmatpush1.msra.mxu0 0.0
        %1284 = vmatprep.subr.mxu0 0.0
        %1285 = vmatpush1.msra.mxu0 0.0
        %1286 = vmatprep.subr.mxu0 0.0
        %1287 = vmatpush1.msra.mxu0 0.0
        %1288 = vmatprep.subr.mxu0 0.0
        %1289 = vmatpush1.msra.mxu0 0.0
        %1290 = vmatprep.subr.mxu0 0.0
        %1291 = vmatpush1.msra.mxu0 0.0
        %1292 = vmatprep.subr.mxu0 0.0
        %1293 = vmatpush1.msra.mxu0 0.0
        %1294 = vmatprep.subr.mxu0 0.0
        %1295 = vmatpush1.msra.mxu0 0.0
        %1296 = vmatprep.subr.mxu0 0.0
        %1297 = vmatpush1.msra.mxu0 0.0
        %1298 = vmatprep.subr.mxu0 0.0
        %1299 = vmatpush1.msra.mxu0 0.0
        %1300 = vmatprep.subr.mxu0 0.0
        %1301 = vmatpush1.msra.mxu0 0.0
        %1302 = vmatprep.subr.mxu0 0.0
        %1303 = vmatpush1.msra.mxu0 0.0
        %1304 = vmatprep.subr.mxu0 0.0
        %1305 = vmatpush1.msra.mxu0 0.0
        %1306 = vmatprep.subr.mxu0 0.0
        %1307 = vmatpush1.msra.mxu0 0.0
        %1308 = vmatprep.subr.mxu0 0.0
        %1309 = vmatpush1.msra.mxu0 0.0
        %1310 = vmatprep.subr.mxu0 0.0
        %1311 = vmatpush1.msra.mxu0 0.0
        %1312 = vmatprep.subr.mxu0 0.0
        %1313 = vmatpush1.msra.mxu0 0.0
        %1314 = vmatprep.subr.mxu0 0.0
        %1315 = vmatpush1.msra.mxu0 0.0
        %1316 = vmatprep.subr.mxu0 0.0
        %1317 = vmatpush1.msra.mxu0 0.0
        %1318 = vmatprep.subr.mxu0 0.0
        %1319 = vmatpush1.msra.mxu0 0.0
        %1320 = vmatprep.mubr.f32.mxu0 0.0
        %1321 = vmatmul.mubr.f32.gmra.mrb[0].mxu0 %v1254
        %v1322 = vpop.f32.mrb[0].mxu0
        %v1323 = vadd.f32 0.0, %v1322
        %v1324 = vpop.f32.mrb[0].mxu0
        %1325 = vdwg.mxu0
        %v1326 = vld [vmem:[%s2 + $0x80] sm:$0xff]
        %v1327 = vld [vmem:[%s2 + $0x88] sm:$0xff]
        %v1328 = vld [vmem:[%s2 + $0x90] sm:$0xff]
        %v1329 = vld [vmem:[%s2 + $0x98] sm:$0xff]
        %v1330 = vld [vmem:[%s2 + $0xa0] sm:$0xff]
        %v1331 = vld [vmem:[%s2 + $0xa8] sm:$0xff]
        %v1332 = vld [vmem:[%s2 + $0xb0] sm:$0xff]
        %v1333 = vld [vmem:[%s2 + $0xb8] sm:$0xff]
        %v1335 = vsel %vm676, %v1323, 0
        %1337 = vmatprep.subr.mxu0 0.0
        %1338 = vmatpush1.msra.mxu0 %v1326
        %1339 = vmatprep.subr.mxu0 0.0
        %1340 = vmatpush1.msra.mxu0 %v1327
        %1341 = vmatprep.subr.mxu0 0.0
        %1342 = vmatpush1.msra.mxu0 %v1328
        %1343 = vmatprep.subr.mxu0 0.0
        %1344 = vmatpush1.msra.mxu0 %v1329
        %1345 = vmatprep.subr.mxu0 0.0
        %1346 = vmatpush1.msra.mxu0 %v1330
        %1347 = vmatprep.subr.mxu0 0.0
        %1348 = vmatpush1.msra.mxu0 %v1331
        %1349 = vmatprep.subr.mxu0 0.0
        %1350 = vmatpush1.msra.mxu0 %v1332
        %1351 = vmatprep.subr.mxu0 0.0
        %1352 = vmatpush1.msra.mxu0 %v1333
        %1353 = vmatprep.subr.mxu0 0.0
        %1354 = vmatpush1.msra.mxu0 0.0
        %1355 = vmatprep.subr.mxu0 0.0
        %1356 = vmatpush1.msra.mxu0 0.0
        %1357 = vmatprep.subr.mxu0 0.0
        %1358 = vmatpush1.msra.mxu0 0.0
        %1359 = vmatprep.subr.mxu0 0.0
        %1360 = vmatpush1.msra.mxu0 0.0
        %1361 = vmatprep.subr.mxu0 0.0
        %1362 = vmatpush1.msra.mxu0 0.0
        %1363 = vmatprep.subr.mxu0 0.0
        %1364 = vmatpush1.msra.mxu0 0.0
        %1365 = vmatprep.subr.mxu0 0.0
        %1366 = vmatpush1.msra.mxu0 0.0
        %1367 = vmatprep.subr.mxu0 0.0
        %1368 = vmatpush1.msra.mxu0 0.0
        %1369 = vmatprep.subr.mxu0 0.0
        %1370 = vmatpush1.msra.mxu0 0.0
        %1371 = vmatprep.subr.mxu0 0.0
        %1372 = vmatpush1.msra.mxu0 0.0
        %1373 = vmatprep.subr.mxu0 0.0
        %1374 = vmatpush1.msra.mxu0 0.0
        %1375 = vmatprep.subr.mxu0 0.0
        %1376 = vmatpush1.msra.mxu0 0.0
        %1377 = vmatprep.subr.mxu0 0.0
        %1378 = vmatpush1.msra.mxu0 0.0
        %1379 = vmatprep.subr.mxu0 0.0
        %1380 = vmatpush1.msra.mxu0 0.0
        %1381 = vmatprep.subr.mxu0 0.0
        %1382 = vmatpush1.msra.mxu0 0.0
        %1383 = vmatprep.subr.mxu0 0.0
        %1384 = vmatpush1.msra.mxu0 0.0
        %1385 = vmatprep.subr.mxu0 0.0
        %1386 = vmatpush1.msra.mxu0 0.0
        %1387 = vmatprep.subr.mxu0 0.0
        %1388 = vmatpush1.msra.mxu0 0.0
        %1389 = vmatprep.subr.mxu0 0.0
        %1390 = vmatpush1.msra.mxu0 0.0
        %1391 = vmatprep.subr.mxu0 0.0
        %1392 = vmatpush1.msra.mxu0 0.0
        %1393 = vmatprep.subr.mxu0 0.0
        %1394 = vmatpush1.msra.mxu0 0.0
        %1395 = vmatprep.subr.mxu0 0.0
        %1396 = vmatpush1.msra.mxu0 0.0
        %1397 = vmatprep.subr.mxu0 0.0
        %1398 = vmatpush1.msra.mxu0 0.0
        %1399 = vmatprep.subr.mxu0 0.0
        %1400 = vmatpush1.msra.mxu0 0.0
        %1401 = vmatprep.mubr.f32.mxu0 0.0
        %1402 = vmatmul.mubr.f32.gmra.mrb[0].mxu0 %v1335
        %v1403 = vpop.f32.mrb[0].mxu0
        %v1404 = vadd.f32 0.0, %v1403
        %v1405 = vpop.f32.mrb[0].mxu0
        %1406 = vdwg.mxu0
        %v1407 = vadd.f32 %v1163, %v1404
        %1408 = vrot.lane.b32.xlu0 %v673, 64
        %v1409 = vpop.permute.xlu0 %1408
        %1410 = vrot.lane.b32.xlu0 %v457, 64
        %v1411 = vpop.permute.xlu0 %1410
        %v1412 = vsel %vm676, %v1409, 0
        %v1414 = vsel %vm676, %v1411, 0
        %1416 = vmatprep.subr.mxu0 0.0
        %1417 = vmatpush1.xpose.msra.mxu0 %v1414
        %1418 = vmatprep.subr.mxu0 0.0
        %1419 = vmatpush1.xpose.msra.mxu0 0.0
        %1420 = vmatprep.subr.mxu0 0.0
        %1421 = vmatpush1.xpose.msra.mxu0 0.0
        %1422 = vmatprep.subr.mxu0 0.0
        %1423 = vmatpush1.xpose.msra.mxu0 0.0
        %1424 = vmatprep.subr.mxu0 0.0
        %1425 = vmatpush1.xpose.msra.mxu0 0.0
        %1426 = vmatprep.subr.mxu0 0.0
        %1427 = vmatpush1.xpose.msra.mxu0 0.0
        %1428 = vmatprep.subr.mxu0 0.0
        %1429 = vmatpush1.xpose.msra.mxu0 0.0
        %1430 = vmatprep.subr.mxu0 0.0
        %1431 = vmatpush1.xpose.msra.mxu0 0.0
        %1432 = vmatprep.subr.mxu0 0.0
        %1433 = vmatpush1.xpose.msra.mxu0 0.0
        %1434 = vmatprep.subr.mxu0 0.0
        %1435 = vmatpush1.xpose.msra.mxu0 0.0
        %1436 = vmatprep.subr.mxu0 0.0
        %1437 = vmatpush1.xpose.msra.mxu0 0.0
        %1438 = vmatprep.subr.mxu0 0.0
        %1439 = vmatpush1.xpose.msra.mxu0 0.0
        %1440 = vmatprep.subr.mxu0 0.0
        %1441 = vmatpush1.xpose.msra.mxu0 0.0
        %1442 = vmatprep.subr.mxu0 0.0
        %1443 = vmatpush1.xpose.msra.mxu0 0.0
        %1444 = vmatprep.subr.mxu0 0.0
        %1445 = vmatpush1.xpose.msra.mxu0 0.0
        %1446 = vmatprep.subr.mxu0 0.0
        %1447 = vmatpush1.xpose.msra.mxu0 0.0
        %1448 = vmatprep.subr.mxu0 0.0
        %1449 = vmatpush1.xpose.msra.mxu0 0.0
        %1450 = vmatprep.subr.mxu0 0.0
        %1451 = vmatpush1.xpose.msra.mxu0 0.0
        %1452 = vmatprep.subr.mxu0 0.0
        %1453 = vmatpush1.xpose.msra.mxu0 0.0
        %1454 = vmatprep.subr.mxu0 0.0
        %1455 = vmatpush1.xpose.msra.mxu0 0.0
        %1456 = vmatprep.subr.mxu0 0.0
        %1457 = vmatpush1.xpose.msra.mxu0 0.0
        %1458 = vmatprep.subr.mxu0 0.0
        %1459 = vmatpush1.xpose.msra.mxu0 0.0
        %1460 = vmatprep.subr.mxu0 0.0
        %1461 = vmatpush1.xpose.msra.mxu0 0.0
        %1462 = vmatprep.subr.mxu0 0.0
        %1463 = vmatpush1.xpose.msra.mxu0 0.0
        %1464 = vmatprep.subr.mxu0 0.0
        %1465 = vmatpush1.xpose.msra.mxu0 0.0
        %1466 = vmatprep.subr.mxu0 0.0
        %1467 = vmatpush1.xpose.msra.mxu0 0.0
        %1468 = vmatprep.subr.mxu0 0.0
        %1469 = vmatpush1.xpose.msra.mxu0 0.0
        %1470 = vmatprep.subr.mxu0 0.0
        %1471 = vmatpush1.xpose.msra.mxu0 0.0
        %1472 = vmatprep.subr.mxu0 0.0
        %1473 = vmatpush1.xpose.msra.mxu0 0.0
        %1474 = vmatprep.subr.mxu0 0.0
        %1475 = vmatpush1.xpose.msra.mxu0 0.0
        %1476 = vmatprep.subr.mxu0 0.0
        %1477 = vmatpush1.xpose.msra.mxu0 0.0
        %1478 = vmatprep.subr.mxu0 0.0
        %1479 = vmatpush1.xpose.msra.mxu0 0.0
        %1480 = vmatprep.mubr.f32.mxu0 0.0
        %1481 = vmatmul.mubr.f32.gmra.mrb[0].mxu0 %v1412
        %v1482 = vpop.f32.mrb[0].mxu0
        %v1483 = vadd.f32 0.0, %v1482
        %v1484 = vpop.f32.mrb[0].mxu0
        %1485 = vdwg.mxu0
        %v1486 = vsel %vm753, %v1483, -inf
        %1487 = vmax.xlane.f32.xlu0 %v1486
        %v1488 = vpop.xlane.xlu0 %1487
        %v1489 = vsub.f32 %v1483, %v1488
        %v1490 = vmul.f32 %v1489, 1.442695
        %v1491 = vpow.pop %v1490
        %v1492 = vsel %vm753, %v1491, 0.0
        %1493 = vadd.xlane.f32.xlu0 %v1492
        %v1494 = vpop.xlane.xlu0 %1493
        %v1495 = vrcp.pop %v1494
        %v1496 = vmul.f32 %v1491, %v1495
        %1498 = vrot.lane.b32.xlu0 %v599, 64
        %v1499 = vpop.permute.xlu0 %1498
        %v1502 = vsel %vm753, %v1496, 0
        %1504 = vmatprep.subr.mxu0 0.0
        %1505 = vmatpush1.msra.mxu0 %v1499
        %1506 = vmatprep.subr.mxu0 0.0
        %1507 = vmatpush1.msra.mxu0 0.0
        %1508 = vmatprep.subr.mxu0 0.0
        %1509 = vmatpush1.msra.mxu0 0.0
        %1510 = vmatprep.subr.mxu0 0.0
        %1511 = vmatpush1.msra.mxu0 0.0
        %1512 = vmatprep.subr.mxu0 0.0
        %1513 = vmatpush1.msra.mxu0 0.0
        %1514 = vmatprep.subr.mxu0 0.0
        %1515 = vmatpush1.msra.mxu0 0.0
        %1516 = vmatprep.subr.mxu0 0.0
        %1517 = vmatpush1.msra.mxu0 0.0
        %1518 = vmatprep.subr.mxu0 0.0
        %1519 = vmatpush1.msra.mxu0 0.0
        %1520 = vmatprep.subr.mxu0 0.0
        %1521 = vmatpush1.msra.mxu0 0.0
        %1522 = vmatprep.subr.mxu0 0.0
        %1523 = vmatpush1.msra.mxu0 0.0
        %1524 = vmatprep.subr.mxu0 0.0
        %1525 = vmatpush1.msra.mxu0 0.0
        %1526 = vmatprep.subr.mxu0 0.0
        %1527 = vmatpush1.msra.mxu0 0.0
        %1528 = vmatprep.subr.mxu0 0.0
        %1529 = vmatpush1.msra.mxu0 0.0
        %1530 = vmatprep.subr.mxu0 0.0
        %1531 = vmatpush1.msra.mxu0 0.0
        %1532 = vmatprep.subr.mxu0 0.0
        %1533 = vmatpush1.msra.mxu0 0.0
        %1534 = vmatprep.subr.mxu0 0.0
        %1535 = vmatpush1.msra.mxu0 0.0
        %1536 = vmatprep.subr.mxu0 0.0
        %1537 = vmatpush1.msra.mxu0 0.0
        %1538 = vmatprep.subr.mxu0 0.0
        %1539 = vmatpush1.msra.mxu0 0.0
        %1540 = vmatprep.subr.mxu0 0.0
        %1541 = vmatpush1.msra.mxu0 0.0
        %1542 = vmatprep.subr.mxu0 0.0
        %1543 = vmatpush1.msra.mxu0 0.0
        %1544 = vmatprep.subr.mxu0 0.0
        %1545 = vmatpush1.msra.mxu0 0.0
        %1546 = vmatprep.subr.mxu0 0.0
        %1547 = vmatpush1.msra.mxu0 0.0
        %1548 = vmatprep.subr.mxu0 0.0
        %1549 = vmatpush1.msra.mxu0 0.0
        %1550 = vmatprep.subr.mxu0 0.0
        %1551 = vmatpush1.msra.mxu0 0.0
        %1552 = vmatprep.subr.mxu0 0.0
        %1553 = vmatpush1.msra.mxu0 0.0
        %1554 = vmatprep.subr.mxu0 0.0
        %1555 = vmatpush1.msra.mxu0 0.0
        %1556 = vmatprep.subr.mxu0 0.0
        %1557 = vmatpush1.msra.mxu0 0.0
        %1558 = vmatprep.subr.mxu0 0.0
        %1559 = vmatpush1.msra.mxu0 0.0
        %1560 = vmatprep.subr.mxu0 0.0
        %1561 = vmatpush1.msra.mxu0 0.0
        %1562 = vmatprep.subr.mxu0 0.0
        %1563 = vmatpush1.msra.mxu0 0.0
        %1564 = vmatprep.subr.mxu0 0.0
        %1565 = vmatpush1.msra.mxu0 0.0
        %1566 = vmatprep.subr.mxu0 0.0
        %1567 = vmatpush1.msra.mxu0 0.0
        %1568 = vmatprep.mubr.f32.mxu0 0.0
        %1569 = vmatmul.mubr.f32.gmra.mrb[0].mxu0 %v1502
        %v1570 = vpop.f32.mrb[0].mxu0
        %v1571 = vadd.f32 0.0, %v1570
        %v1572 = vpop.f32.mrb[0].mxu0
        %1573 = vdwg.mxu0
        %v1574 = vld [vmem:[%s2 + $0xc0] sm:$0xff]
        %v1575 = vld [vmem:[%s2 + $0xc8] sm:$0xff]
        %v1576 = vld [vmem:[%s2 + $0xd0] sm:$0xff]
        %v1577 = vld [vmem:[%s2 + $0xd8] sm:$0xff]
        %v1578 = vld [vmem:[%s2 + $0xe0] sm:$0xff]
        %v1579 = vld [vmem:[%s2 + $0xe8] sm:$0xff]
        %v1580 = vld [vmem:[%s2 + $0xf0] sm:$0xff]
        %v1581 = vld [vmem:[%s2 + $0xf8] sm:$0xff]
        %v1583 = vsel %vm676, %v1571, 0
        %1585 = vmatprep.subr.mxu0 0.0
        %1586 = vmatpush1.msra.mxu0 %v1574
        %1587 = vmatprep.subr.mxu0 0.0
        %1588 = vmatpush1.msra.mxu0 %v1575
        %1589 = vmatprep.subr.mxu0 0.0
        %1590 = vmatpush1.msra.mxu0 %v1576
        %1591 = vmatprep.subr.mxu0 0.0
        %1592 = vmatpush1.msra.mxu0 %v1577
        %1593 = vmatprep.subr.mxu0 0.0
        %1594 = vmatpush1.msra.mxu0 %v1578
        %1595 = vmatprep.subr.mxu0 0.0
        %1596 = vmatpush1.msra.mxu0 %v1579
        %1597 = vmatprep.subr.mxu0 0.0
        %1598 = vmatpush1.msra.mxu0 %v1580
        %1599 = vmatprep.subr.mxu0 0.0
        %1600 = vmatpush1.msra.mxu0 %v1581
        %1601 = vmatprep.subr.mxu0 0.0
        %1602 = vmatpush1.msra.mxu0 0.0
        %1603 = vmatprep.subr.mxu0 0.0
        %1604 = vmatpush1.msra.mxu0 0.0
        %1605 = vmatprep.subr.mxu0 0.0
        %1606 = vmatpush1.msra.mxu0 0.0
        %1607 = vmatprep.subr.mxu0 0.0
        %1608 = vmatpush1.msra.mxu0 0.0
        %1609 = vmatprep.subr.mxu0 0.0
        %1610 = vmatpush1.msra.mxu0 0.0
        %1611 = vmatprep.subr.mxu0 0.0
        %1612 = vmatpush1.msra.mxu0 0.0
        %1613 = vmatprep.subr.mxu0 0.0
        %1614 = vmatpush1.msra.mxu0 0.0
        %1615 = vmatprep.subr.mxu0 0.0
        %1616 = vmatpush1.msra.mxu0 0.0
        %1617 = vmatprep.subr.mxu0 0.0
        %1618 = vmatpush1.msra.mxu0 0.0
        %1619 = vmatprep.subr.mxu0 0.0
        %1620 = vmatpush1.msra.mxu0 0.0
        %1621 = vmatprep.subr.mxu0 0.0
        %1622 = vmatpush1.msra.mxu0 0.0
        %1623 = vmatprep.subr.mxu0 0.0
        %1624 = vmatpush1.msra.mxu0 0.0
        %1625 = vmatprep.subr.mxu0 0.0
        %1626 = vmatpush1.msra.mxu0 0.0
        %1627 = vmatprep.subr.mxu0 0.0
        %1628 = vmatpush1.msra.mxu0 0.0
        %1629 = vmatprep.subr.mxu0 0.0
        %1630 = vmatpush1.msra.mxu0 0.0
        %1631 = vmatprep.subr.mxu0 0.0
        %1632 = vmatpush1.msra.mxu0 0.0
        %1633 = vmatprep.subr.mxu0 0.0
        %1634 = vmatpush1.msra.mxu0 0.0
        %1635 = vmatprep.subr.mxu0 0.0
        %1636 = vmatpush1.msra.mxu0 0.0
        %1637 = vmatprep.subr.mxu0 0.0
        %1638 = vmatpush1.msra.mxu0 0.0
        %1639 = vmatprep.subr.mxu0 0.0
        %1640 = vmatpush1.msra.mxu0 0.0
        %1641 = vmatprep.subr.mxu0 0.0
        %1642 = vmatpush1.msra.mxu0 0.0
        %1643 = vmatprep.subr.mxu0 0.0
        %1644 = vmatpush1.msra.mxu0 0.0
        %1645 = vmatprep.subr.mxu0 0.0
        %1646 = vmatpush1.msra.mxu0 0.0
        %1647 = vmatprep.subr.mxu0 0.0
        %1648 = vmatpush1.msra.mxu0 0.0
        %1649 = vmatprep.mubr.f32.mxu0 0.0
        %1650 = vmatmul.mubr.f32.gmra.mrb[0].mxu0 %v1583
        %v1651 = vpop.f32.mrb[0].mxu0
        %v1652 = vadd.f32 0.0, %v1651
        %v1653 = vpop.f32.mrb[0].mxu0
        %1654 = vdwg.mxu0
        %v1655 = vadd.f32 %v1407, %v1652
        %v1657 = vsel %vm676, %v674, 0
        %v1660 = vsel %vm676, %v526, 0
        %1662 = vmatprep.subr.mxu0 0.0
        %1663 = vmatpush1.xpose.msra.mxu0 %v1660
        %1664 = vmatprep.subr.mxu0 0.0
        %1665 = vmatpush1.xpose.msra.mxu0 0.0
        %1666 = vmatprep.subr.mxu0 0.0
        %1667 = vmatpush1.xpose.msra.mxu0 0.0
        %1668 = vmatprep.subr.mxu0 0.0
        %1669 = vmatpush1.xpose.msra.mxu0 0.0
        %1670 = vmatprep.subr.mxu0 0.0
        %1671 = vmatpush1.xpose.msra.mxu0 0.0
        %1672 = vmatprep.subr.mxu0 0.0
        %1673 = vmatpush1.xpose.msra.mxu0 0.0
        %1674 = vmatprep.subr.mxu0 0.0
        %1675 = vmatpush1.xpose.msra.mxu0 0.0
        %1676 = vmatprep.subr.mxu0 0.0
        %1677 = vmatpush1.xpose.msra.mxu0 0.0
        %1678 = vmatprep.subr.mxu0 0.0
        %1679 = vmatpush1.xpose.msra.mxu0 0.0
        %1680 = vmatprep.subr.mxu0 0.0
        %1681 = vmatpush1.xpose.msra.mxu0 0.0
        %1682 = vmatprep.subr.mxu0 0.0
        %1683 = vmatpush1.xpose.msra.mxu0 0.0
        %1684 = vmatprep.subr.mxu0 0.0
        %1685 = vmatpush1.xpose.msra.mxu0 0.0
        %1686 = vmatprep.subr.mxu0 0.0
        %1687 = vmatpush1.xpose.msra.mxu0 0.0
        %1688 = vmatprep.subr.mxu0 0.0
        %1689 = vmatpush1.xpose.msra.mxu0 0.0
        %1690 = vmatprep.subr.mxu0 0.0
        %1691 = vmatpush1.xpose.msra.mxu0 0.0
        %1692 = vmatprep.subr.mxu0 0.0
        %1693 = vmatpush1.xpose.msra.mxu0 0.0
        %1694 = vmatprep.subr.mxu0 0.0
        %1695 = vmatpush1.xpose.msra.mxu0 0.0
        %1696 = vmatprep.subr.mxu0 0.0
        %1697 = vmatpush1.xpose.msra.mxu0 0.0
        %1698 = vmatprep.subr.mxu0 0.0
        %1699 = vmatpush1.xpose.msra.mxu0 0.0
        %1700 = vmatprep.subr.mxu0 0.0
        %1701 = vmatpush1.xpose.msra.mxu0 0.0
        %1702 = vmatprep.subr.mxu0 0.0
        %1703 = vmatpush1.xpose.msra.mxu0 0.0
        %1704 = vmatprep.subr.mxu0 0.0
        %1705 = vmatpush1.xpose.msra.mxu0 0.0
        %1706 = vmatprep.subr.mxu0 0.0
        %1707 = vmatpush1.xpose.msra.mxu0 0.0
        %1708 = vmatprep.subr.mxu0 0.0
        %1709 = vmatpush1.xpose.msra.mxu0 0.0
        %1710 = vmatprep.subr.mxu0 0.0
        %1711 = vmatpush1.xpose.msra.mxu0 0.0
        %1712 = vmatprep.subr.mxu0 0.0
        %1713 = vmatpush1.xpose.msra.mxu0 0.0
        %1714 = vmatprep.subr.mxu0 0.0
        %1715 = vmatpush1.xpose.msra.mxu0 0.0
        %1716 = vmatprep.subr.mxu0 0.0
        %1717 = vmatpush1.xpose.msra.mxu0 0.0
        %1718 = vmatprep.subr.mxu0 0.0
        %1719 = vmatpush1.xpose.msra.mxu0 0.0
        %1720 = vmatprep.subr.mxu0 0.0
        %1721 = vmatpush1.xpose.msra.mxu0 0.0
        %1722 = vmatprep.subr.mxu0 0.0
        %1723 = vmatpush1.xpose.msra.mxu0 0.0
        %1724 = vmatprep.subr.mxu0 0.0
        %1725 = vmatpush1.xpose.msra.mxu0 0.0
        %1726 = vmatprep.mubr.f32.mxu0 0.0
        %1727 = vmatmul.mubr.f32.gmra.mrb[0].mxu0 %v1657
        %v1728 = vpop.f32.mrb[0].mxu0
        %v1729 = vadd.f32 0.0, %v1728
        %v1730 = vpop.f32.mrb[0].mxu0
        %1731 = vdwg.mxu0
        %v1732 = vsel %vm753, %v1729, -inf
        %1733 = vmax.xlane.f32.xlu0 %v1732
        %v1734 = vpop.xlane.xlu0 %1733
        %v1735 = vsub.f32 %v1729, %v1734
        %v1736 = vmul.f32 %v1735, 1.442695
        %v1737 = vpow.pop %v1736
        %v1738 = vsel %vm753, %v1737, 0.0
        %1739 = vadd.xlane.f32.xlu0 %v1738
        %v1740 = vpop.xlane.xlu0 %1739
        %v1741 = vrcp.pop %v1740
        %v1742 = vmul.f32 %v1737, %v1741
        %v1744 = vsel %vm753, %v1742, 0
        %1746 = vmatprep.subr.mxu0 0.0
        %1747 = vmatpush1.msra.mxu0 %v668
        %1748 = vmatprep.subr.mxu0 0.0
        %1749 = vmatpush1.msra.mxu0 0.0
        %1750 = vmatprep.subr.mxu0 0.0
        %1751 = vmatpush1.msra.mxu0 0.0
        %1752 = vmatprep.subr.mxu0 0.0
        %1753 = vmatpush1.msra.mxu0 0.0
        %1754 = vmatprep.subr.mxu0 0.0
        %1755 = vmatpush1.msra.mxu0 0.0
        %1756 = vmatprep.subr.mxu0 0.0
        %1757 = vmatpush1.msra.mxu0 0.0
        %1758 = vmatprep.subr.mxu0 0.0
        %1759 = vmatpush1.msra.mxu0 0.0
        %1760 = vmatprep.subr.mxu0 0.0
        %1761 = vmatpush1.msra.mxu0 0.0
        %1762 = vmatprep.subr.mxu0 0.0
        %1763 = vmatpush1.msra.mxu0 0.0
        %1764 = vmatprep.subr.mxu0 0.0
        %1765 = vmatpush1.msra.mxu0 0.0
        %1766 = vmatprep.subr.mxu0 0.0
        %1767 = vmatpush1.msra.mxu0 0.0
        %1768 = vmatprep.subr.mxu0 0.0
        %1769 = vmatpush1.msra.mxu0 0.0
        %1770 = vmatprep.subr.mxu0 0.0
        %1771 = vmatpush1.msra.mxu0 0.0
        %1772 = vmatprep.subr.mxu0 0.0
        %1773 = vmatpush1.msra.mxu0 0.0
        %1774 = vmatprep.subr.mxu0 0.0
        %1775 = vmatpush1.msra.mxu0 0.0
        %1776 = vmatprep.subr.mxu0 0.0
        %1777 = vmatpush1.msra.mxu0 0.0
        %1778 = vmatprep.subr.mxu0 0.0
        %1779 = vmatpush1.msra.mxu0 0.0
        %1780 = vmatprep.subr.mxu0 0.0
        %1781 = vmatpush1.msra.mxu0 0.0
        %1782 = vmatprep.subr.mxu0 0.0
        %1783 = vmatpush1.msra.mxu0 0.0
        %1784 = vmatprep.subr.mxu0 0.0
        %1785 = vmatpush1.msra.mxu0 0.0
        %1786 = vmatprep.subr.mxu0 0.0
        %1787 = vmatpush1.msra.mxu0 0.0
        %1788 = vmatprep.subr.mxu0 0.0
        %1789 = vmatpush1.msra.mxu0 0.0
        %1790 = vmatprep.subr.mxu0 0.0
        %1791 = vmatpush1.msra.mxu0 0.0
        %1792 = vmatprep.subr.mxu0 0.0
        %1793 = vmatpush1.msra.mxu0 0.0
        %1794 = vmatprep.subr.mxu0 0.0
        %1795 = vmatpush1.msra.mxu0 0.0
        %1796 = vmatprep.subr.mxu0 0.0
        %1797 = vmatpush1.msra.mxu0 0.0
        %1798 = vmatprep.subr.mxu0 0.0
        %1799 = vmatpush1.msra.mxu0 0.0
        %1800 = vmatprep.subr.mxu0 0.0
        %1801 = vmatpush1.msra.mxu0 0.0
        %1802 = vmatprep.subr.mxu0 0.0
        %1803 = vmatpush1.msra.mxu0 0.0
        %1804 = vmatprep.subr.mxu0 0.0
        %1805 = vmatpush1.msra.mxu0 0.0
        %1806 = vmatprep.subr.mxu0 0.0
        %1807 = vmatpush1.msra.mxu0 0.0
        %1808 = vmatprep.subr.mxu0 0.0
        %1809 = vmatpush1.msra.mxu0 0.0
        %1810 = vmatprep.mubr.f32.mxu0 0.0
        %1811 = vmatmul.mubr.f32.gmra.mrb[0].mxu0 %v1744
        %v1812 = vpop.f32.mrb[0].mxu0
        %v1813 = vadd.f32 0.0, %v1812
        %v1814 = vpop.f32.mrb[0].mxu0
        %1815 = vdwg.mxu0
        %v1816 = vld [vmem:[%s2 + $0x100] sm:$0xff]
        %v1817 = vld [vmem:[%s2 + $0x108] sm:$0xff]
        %v1818 = vld [vmem:[%s2 + $0x110] sm:$0xff]
        %v1819 = vld [vmem:[%s2 + $0x118] sm:$0xff]
        %v1820 = vld [vmem:[%s2 + $0x120] sm:$0xff]
        %v1821 = vld [vmem:[%s2 + $0x128] sm:$0xff]
        %v1822 = vld [vmem:[%s2 + $0x130] sm:$0xff]
        %v1823 = vld [vmem:[%s2 + $0x138] sm:$0xff]
        %v1825 = vsel %vm676, %v1813, 0
        %1827 = vmatprep.subr.mxu0 0.0
        %1828 = vmatpush1.msra.mxu0 %v1816
        %1829 = vmatprep.subr.mxu0 0.0
        %1830 = vmatpush1.msra.mxu0 %v1817
        %1831 = vmatprep.subr.mxu0 0.0
        %1832 = vmatpush1.msra.mxu0 %v1818
        %1833 = vmatprep.subr.mxu0 0.0
        %1834 = vmatpush1.msra.mxu0 %v1819
        %1835 = vmatprep.subr.mxu0 0.0
        %1836 = vmatpush1.msra.mxu0 %v1820
        %1837 = vmatprep.subr.mxu0 0.0
        %1838 = vmatpush1.msra.mxu0 %v1821
        %1839 = vmatprep.subr.mxu0 0.0
        %1840 = vmatpush1.msra.mxu0 %v1822
        %1841 = vmatprep.subr.mxu0 0.0
        %1842 = vmatpush1.msra.mxu0 %v1823
        %1843 = vmatprep.subr.mxu0 0.0
        %1844 = vmatpush1.msra.mxu0 0.0
        %1845 = vmatprep.subr.mxu0 0.0
        %1846 = vmatpush1.msra.mxu0 0.0
        %1847 = vmatprep.subr.mxu0 0.0
        %1848 = vmatpush1.msra.mxu0 0.0
        %1849 = vmatprep.subr.mxu0 0.0
        %1850 = vmatpush1.msra.mxu0 0.0
        %1851 = vmatprep.subr.mxu0 0.0
        %1852 = vmatpush1.msra.mxu0 0.0
        %1853 = vmatprep.subr.mxu0 0.0
        %1854 = vmatpush1.msra.mxu0 0.0
        %1855 = vmatprep.subr.mxu0 0.0
        %1856 = vmatpush1.msra.mxu0 0.0
        %1857 = vmatprep.subr.mxu0 0.0
        %1858 = vmatpush1.msra.mxu0 0.0
        %1859 = vmatprep.subr.mxu0 0.0
        %1860 = vmatpush1.msra.mxu0 0.0
        %1861 = vmatprep.subr.mxu0 0.0
        %1862 = vmatpush1.msra.mxu0 0.0
        %1863 = vmatprep.subr.mxu0 0.0
        %1864 = vmatpush1.msra.mxu0 0.0
        %1865 = vmatprep.subr.mxu0 0.0
        %1866 = vmatpush1.msra.mxu0 0.0
        %1867 = vmatprep.subr.mxu0 0.0
        %1868 = vmatpush1.msra.mxu0 0.0
        %1869 = vmatprep.subr.mxu0 0.0
        %1870 = vmatpush1.msra.mxu0 0.0
        %1871 = vmatprep.subr.mxu0 0.0
        %1872 = vmatpush1.msra.mxu0 0.0
        %1873 = vmatprep.subr.mxu0 0.0
        %1874 = vmatpush1.msra.mxu0 0.0
        %1875 = vmatprep.subr.mxu0 0.0
        %1876 = vmatpush1.msra.mxu0 0.0
        %1877 = vmatprep.subr.mxu0 0.0
        %1878 = vmatpush1.msra.mxu0 0.0
        %1879 = vmatprep.subr.mxu0 0.0
        %1880 = vmatpush1.msra.mxu0 0.0
        %1881 = vmatprep.subr.mxu0 0.0
        %1882 = vmatpush1.msra.mxu0 0.0
        %1883 = vmatprep.subr.mxu0 0.0
        %1884 = vmatpush1.msra.mxu0 0.0
        %1885 = vmatprep.subr.mxu0 0.0
        %1886 = vmatpush1.msra.mxu0 0.0
        %1887 = vmatprep.subr.mxu0 0.0
        %1888 = vmatpush1.msra.mxu0 0.0
        %1889 = vmatprep.subr.mxu0 0.0
        %1890 = vmatpush1.msra.mxu0 0.0
        %1891 = vmatprep.mubr.f32.mxu0 0.0
        %1892 = vmatmul.mubr.f32.gmra.mrb[0].mxu0 %v1825
        %v1893 = vpop.f32.mrb[0].mxu0
        %v1894 = vadd.f32 0.0, %v1893
        %v1895 = vpop.f32.mrb[0].mxu0
        %1896 = vdwg.mxu0
        %v1897 = vadd.f32 %v1655, %v1894
        %1898 = vrot.lane.b32.xlu0 %v674, 64
        %v1899 = vpop.permute.xlu0 %1898
        %1900 = vrot.lane.b32.xlu0 %v526, 64
        %v1901 = vpop.permute.xlu0 %1900
        %v1902 = vsel %vm676, %v1899, 0
        %v1904 = vsel %vm676, %v1901, 0
        %1906 = vmatprep.subr.mxu0 0.0
        %1907 = vmatpush1.xpose.msra.mxu0 %v1904
        %1908 = vmatprep.subr.mxu0 0.0
        %1909 = vmatpush1.xpose.msra.mxu0 0.0
        %1910 = vmatprep.subr.mxu0 0.0
        %1911 = vmatpush1.xpose.msra.mxu0 0.0
        %1912 = vmatprep.subr.mxu0 0.0
        %1913 = vmatpush1.xpose.msra.mxu0 0.0
        %1914 = vmatprep.subr.mxu0 0.0
        %1915 = vmatpush1.xpose.msra.mxu0 0.0
        %1916 = vmatprep.subr.mxu0 0.0
        %1917 = vmatpush1.xpose.msra.mxu0 0.0
        %1918 = vmatprep.subr.mxu0 0.0
        %1919 = vmatpush1.xpose.msra.mxu0 0.0
        %1920 = vmatprep.subr.mxu0 0.0
        %1921 = vmatpush1.xpose.msra.mxu0 0.0
        %1922 = vmatprep.subr.mxu0 0.0
        %1923 = vmatpush1.xpose.msra.mxu0 0.0
        %1924 = vmatprep.subr.mxu0 0.0
        %1925 = vmatpush1.xpose.msra.mxu0 0.0
        %1926 = vmatprep.subr.mxu0 0.0
        %1927 = vmatpush1.xpose.msra.mxu0 0.0
        %1928 = vmatprep.subr.mxu0 0.0
        %1929 = vmatpush1.xpose.msra.mxu0 0.0
        %1930 = vmatprep.subr.mxu0 0.0
        %1931 = vmatpush1.xpose.msra.mxu0 0.0
        %1932 = vmatprep.subr.mxu0 0.0
        %1933 = vmatpush1.xpose.msra.mxu0 0.0
        %1934 = vmatprep.subr.mxu0 0.0
        %1935 = vmatpush1.xpose.msra.mxu0 0.0
        %1936 = vmatprep.subr.mxu0 0.0
        %1937 = vmatpush1.xpose.msra.mxu0 0.0
        %1938 = vmatprep.subr.mxu0 0.0
        %1939 = vmatpush1.xpose.msra.mxu0 0.0
        %1940 = vmatprep.subr.mxu0 0.0
        %1941 = vmatpush1.xpose.msra.mxu0 0.0
        %1942 = vmatprep.subr.mxu0 0.0
        %1943 = vmatpush1.xpose.msra.mxu0 0.0
        %1944 = vmatprep.subr.mxu0 0.0
        %1945 = vmatpush1.xpose.msra.mxu0 0.0
        %1946 = vmatprep.subr.mxu0 0.0
        %1947 = vmatpush1.xpose.msra.mxu0 0.0
        %1948 = vmatprep.subr.mxu0 0.0
        %1949 = vmatpush1.xpose.msra.mxu0 0.0
        %1950 = vmatprep.subr.mxu0 0.0
        %1951 = vmatpush1.xpose.msra.mxu0 0.0
        %1952 = vmatprep.subr.mxu0 0.0
        %1953 = vmatpush1.xpose.msra.mxu0 0.0
        %1954 = vmatprep.subr.mxu0 0.0
        %1955 = vmatpush1.xpose.msra.mxu0 0.0
        %1956 = vmatprep.subr.mxu0 0.0
        %1957 = vmatpush1.xpose.msra.mxu0 0.0
        %1958 = vmatprep.subr.mxu0 0.0
        %1959 = vmatpush1.xpose.msra.mxu0 0.0
        %1960 = vmatprep.subr.mxu0 0.0
        %1961 = vmatpush1.xpose.msra.mxu0 0.0
        %1962 = vmatprep.subr.mxu0 0.0
        %1963 = vmatpush1.xpose.msra.mxu0 0.0
        %1964 = vmatprep.subr.mxu0 0.0
        %1965 = vmatpush1.xpose.msra.mxu0 0.0
        %1966 = vmatprep.subr.mxu0 0.0
        %1967 = vmatpush1.xpose.msra.mxu0 0.0
        %1968 = vmatprep.subr.mxu0 0.0
        %1969 = vmatpush1.xpose.msra.mxu0 0.0
        %1970 = vmatprep.mubr.f32.mxu0 0.0
        %1971 = vmatmul.mubr.f32.gmra.mrb[0].mxu0 %v1902
        %v1972 = vpop.f32.mrb[0].mxu0
        %v1973 = vadd.f32 0.0, %v1972
        %v1974 = vpop.f32.mrb[0].mxu0
        %1975 = vdwg.mxu0
        %v1976 = vsel %vm753, %v1973, -inf
        %1977 = vmax.xlane.f32.xlu0 %v1976
        %v1978 = vpop.xlane.xlu0 %1977
        %v1979 = vsub.f32 %v1973, %v1978
        %v1980 = vmul.f32 %v1979, 1.442695
        %v1981 = vpow.pop %v1980
        %v1982 = vsel %vm753, %v1981, 0.0
        %1983 = vadd.xlane.f32.xlu0 %v1982
        %v1984 = vpop.xlane.xlu0 %1983
        %v1985 = vrcp.pop %v1984
        %v1986 = vmul.f32 %v1981, %v1985
        %1988 = vrot.lane.b32.xlu0 %v668, 64
        %v1989 = vpop.permute.xlu0 %1988
        %v1992 = vsel %vm753, %v1986, 0
        %1994 = vmatprep.subr.mxu0 0.0
        %1995 = vmatpush1.msra.mxu0 %v1989
        %1996 = vmatprep.subr.mxu0 0.0
        %1997 = vmatpush1.msra.mxu0 0.0
        %1998 = vmatprep.subr.mxu0 0.0
        %1999 = vmatpush1.msra.mxu0 0.0
        %2000 = vmatprep.subr.mxu0 0.0
        %2001 = vmatpush1.msra.mxu0 0.0
        %2002 = vmatprep.subr.mxu0 0.0
        %2003 = vmatpush1.msra.mxu0 0.0
        %2004 = vmatprep.subr.mxu0 0.0
        %2005 = vmatpush1.msra.mxu0 0.0
        %2006 = vmatprep.subr.mxu0 0.0
        %2007 = vmatpush1.msra.mxu0 0.0
        %2008 = vmatprep.subr.mxu0 0.0
        %2009 = vmatpush1.msra.mxu0 0.0
        %2010 = vmatprep.subr.mxu0 0.0
        %2011 = vmatpush1.msra.mxu0 0.0
        %2012 = vmatprep.subr.mxu0 0.0
        %2013 = vmatpush1.msra.mxu0 0.0
        %2014 = vmatprep.subr.mxu0 0.0
        %2015 = vmatpush1.msra.mxu0 0.0
        %2016 = vmatprep.subr.mxu0 0.0
        %2017 = vmatpush1.msra.mxu0 0.0
        %2018 = vmatprep.subr.mxu0 0.0
        %2019 = vmatpush1.msra.mxu0 0.0
        %2020 = vmatprep.subr.mxu0 0.0
        %2021 = vmatpush1.msra.mxu0 0.0
        %2022 = vmatprep.subr.mxu0 0.0
        %2023 = vmatpush1.msra.mxu0 0.0
        %2024 = vmatprep.subr.mxu0 0.0
        %2025 = vmatpush1.msra.mxu0 0.0
        %2026 = vmatprep.subr.mxu0 0.0
        %2027 = vmatpush1.msra.mxu0 0.0
        %2028 = vmatprep.subr.mxu0 0.0
        %2029 = vmatpush1.msra.mxu0 0.0
        %2030 = vmatprep.subr.mxu0 0.0
        %2031 = vmatpush1.msra.mxu0 0.0
        %2032 = vmatprep.subr.mxu0 0.0
        %2033 = vmatpush1.msra.mxu0 0.0
        %2034 = vmatprep.subr.mxu0 0.0
        %2035 = vmatpush1.msra.mxu0 0.0
        %2036 = vmatprep.subr.mxu0 0.0
        %2037 = vmatpush1.msra.mxu0 0.0
        %2038 = vmatprep.subr.mxu0 0.0
        %2039 = vmatpush1.msra.mxu0 0.0
        %2040 = vmatprep.subr.mxu0 0.0
        %2041 = vmatpush1.msra.mxu0 0.0
        %2042 = vmatprep.subr.mxu0 0.0
        %2043 = vmatpush1.msra.mxu0 0.0
        %2044 = vmatprep.subr.mxu0 0.0
        %2045 = vmatpush1.msra.mxu0 0.0
        %2046 = vmatprep.subr.mxu0 0.0
        %2047 = vmatpush1.msra.mxu0 0.0
        %2048 = vmatprep.subr.mxu0 0.0
        %2049 = vmatpush1.msra.mxu0 0.0
        %2050 = vmatprep.subr.mxu0 0.0
        %2051 = vmatpush1.msra.mxu0 0.0
        %2052 = vmatprep.subr.mxu0 0.0
        %2053 = vmatpush1.msra.mxu0 0.0
        %2054 = vmatprep.subr.mxu0 0.0
        %2055 = vmatpush1.msra.mxu0 0.0
        %2056 = vmatprep.subr.mxu0 0.0
        %2057 = vmatpush1.msra.mxu0 0.0
        %2058 = vmatprep.mubr.f32.mxu0 0.0
        %2059 = vmatmul.mubr.f32.gmra.mrb[0].mxu0 %v1992
        %v2060 = vpop.f32.mrb[0].mxu0
        %v2061 = vadd.f32 0.0, %v2060
        %v2062 = vpop.f32.mrb[0].mxu0
        %2063 = vdwg.mxu0
        %v2064 = vld [vmem:[%s2 + $0x140] sm:$0xff]
        %v2065 = vld [vmem:[%s2 + $0x148] sm:$0xff]
        %v2066 = vld [vmem:[%s2 + $0x150] sm:$0xff]
        %v2067 = vld [vmem:[%s2 + $0x158] sm:$0xff]
        %v2068 = vld [vmem:[%s2 + $0x160] sm:$0xff]
        %v2069 = vld [vmem:[%s2 + $0x168] sm:$0xff]
        %v2070 = vld [vmem:[%s2 + $0x170] sm:$0xff]
        %v2071 = vld [vmem:[%s2 + $0x178] sm:$0xff]
        %v2073 = vsel %vm676, %v2061, 0
        %2075 = vmatprep.subr.mxu0 0.0
        %2076 = vmatpush1.msra.mxu0 %v2064
        %2077 = vmatprep.subr.mxu0 0.0
        %2078 = vmatpush1.msra.mxu0 %v2065
        %2079 = vmatprep.subr.mxu0 0.0
        %2080 = vmatpush1.msra.mxu0 %v2066
        %2081 = vmatprep.subr.mxu0 0.0
        %2082 = vmatpush1.msra.mxu0 %v2067
        %2083 = vmatprep.subr.mxu0 0.0
        %2084 = vmatpush1.msra.mxu0 %v2068
        %2085 = vmatprep.subr.mxu0 0.0
        %2086 = vmatpush1.msra.mxu0 %v2069
        %2087 = vmatprep.subr.mxu0 0.0
        %2088 = vmatpush1.msra.mxu0 %v2070
        %2089 = vmatprep.subr.mxu0 0.0
        %2090 = vmatpush1.msra.mxu0 %v2071
        %2091 = vmatprep.subr.mxu0 0.0
        %2092 = vmatpush1.msra.mxu0 0.0
        %2093 = vmatprep.subr.mxu0 0.0
        %2094 = vmatpush1.msra.mxu0 0.0
        %2095 = vmatprep.subr.mxu0 0.0
        %2096 = vmatpush1.msra.mxu0 0.0
        %2097 = vmatprep.subr.mxu0 0.0
        %2098 = vmatpush1.msra.mxu0 0.0
        %2099 = vmatprep.subr.mxu0 0.0
        %2100 = vmatpush1.msra.mxu0 0.0
        %2101 = vmatprep.subr.mxu0 0.0
        %2102 = vmatpush1.msra.mxu0 0.0
        %2103 = vmatprep.subr.mxu0 0.0
        %2104 = vmatpush1.msra.mxu0 0.0
        %2105 = vmatprep.subr.mxu0 0.0
        %2106 = vmatpush1.msra.mxu0 0.0
        %2107 = vmatprep.subr.mxu0 0.0
        %2108 = vmatpush1.msra.mxu0 0.0
        %2109 = vmatprep.subr.mxu0 0.0
        %2110 = vmatpush1.msra.mxu0 0.0
        %2111 = vmatprep.subr.mxu0 0.0
        %2112 = vmatpush1.msra.mxu0 0.0
        %2113 = vmatprep.subr.mxu0 0.0
        %2114 = vmatpush1.msra.mxu0 0.0
        %2115 = vmatprep.subr.mxu0 0.0
        %2116 = vmatpush1.msra.mxu0 0.0
        %2117 = vmatprep.subr.mxu0 0.0
        %2118 = vmatpush1.msra.mxu0 0.0
        %2119 = vmatprep.subr.mxu0 0.0
        %2120 = vmatpush1.msra.mxu0 0.0
        %2121 = vmatprep.subr.mxu0 0.0
        %2122 = vmatpush1.msra.mxu0 0.0
        %2123 = vmatprep.subr.mxu0 0.0
        %2124 = vmatpush1.msra.mxu0 0.0
        %2125 = vmatprep.subr.mxu0 0.0
        %2126 = vmatpush1.msra.mxu0 0.0
        %2127 = vmatprep.subr.mxu0 0.0
        %2128 = vmatpush1.msra.mxu0 0.0
        %2129 = vmatprep.subr.mxu0 0.0
        %2130 = vmatpush1.msra.mxu0 0.0
        %2131 = vmatprep.subr.mxu0 0.0
        %2132 = vmatpush1.msra.mxu0 0.0
        %2133 = vmatprep.subr.mxu0 0.0
        %2134 = vmatpush1.msra.mxu0 0.0
        %2135 = vmatprep.subr.mxu0 0.0
        %2136 = vmatpush1.msra.mxu0 0.0
        %2137 = vmatprep.subr.mxu0 0.0
        %2138 = vmatpush1.msra.mxu0 0.0
        %2139 = vmatprep.mubr.f32.mxu0 0.0
        %2140 = vmatmul.mubr.f32.gmra.mrb[0].mxu0 %v2073
        %v2141 = vpop.f32.mrb[0].mxu0
        %v2142 = vadd.f32 0.0, %v2141
        %v2143 = vpop.f32.mrb[0].mxu0
        %2144 = vdwg.mxu0
        %v2145 = vadd.f32 %v1897, %v2142
        %v2147 = vsel %vm676, %v675, 0
        %v2150 = vsel %vm676, %v528, 0
        %2152 = vmatprep.subr.mxu0 0.0
        %2153 = vmatpush1.xpose.msra.mxu0 %v2150
        %2154 = vmatprep.subr.mxu0 0.0
        %2155 = vmatpush1.xpose.msra.mxu0 0.0
        %2156 = vmatprep.subr.mxu0 0.0
        %2157 = vmatpush1.xpose.msra.mxu0 0.0
        %2158 = vmatprep.subr.mxu0 0.0
        %2159 = vmatpush1.xpose.msra.mxu0 0.0
        %2160 = vmatprep.subr.mxu0 0.0
        %2161 = vmatpush1.xpose.msra.mxu0 0.0
        %2162 = vmatprep.subr.mxu0 0.0
        %2163 = vmatpush1.xpose.msra.mxu0 0.0
        %2164 = vmatprep.subr.mxu0 0.0
        %2165 = vmatpush1.xpose.msra.mxu0 0.0
        %2166 = vmatprep.subr.mxu0 0.0
        %2167 = vmatpush1.xpose.msra.mxu0 0.0
        %2168 = vmatprep.subr.mxu0 0.0
        %2169 = vmatpush1.xpose.msra.mxu0 0.0
        %2170 = vmatprep.subr.mxu0 0.0
        %2171 = vmatpush1.xpose.msra.mxu0 0.0
        %2172 = vmatprep.subr.mxu0 0.0
        %2173 = vmatpush1.xpose.msra.mxu0 0.0
        %2174 = vmatprep.subr.mxu0 0.0
        %2175 = vmatpush1.xpose.msra.mxu0 0.0
        %2176 = vmatprep.subr.mxu0 0.0
        %2177 = vmatpush1.xpose.msra.mxu0 0.0
        %2178 = vmatprep.subr.mxu0 0.0
        %2179 = vmatpush1.xpose.msra.mxu0 0.0
        %2180 = vmatprep.subr.mxu0 0.0
        %2181 = vmatpush1.xpose.msra.mxu0 0.0
        %2182 = vmatprep.subr.mxu0 0.0
        %2183 = vmatpush1.xpose.msra.mxu0 0.0
        %2184 = vmatprep.subr.mxu0 0.0
        %2185 = vmatpush1.xpose.msra.mxu0 0.0
        %2186 = vmatprep.subr.mxu0 0.0
        %2187 = vmatpush1.xpose.msra.mxu0 0.0
        %2188 = vmatprep.subr.mxu0 0.0
        %2189 = vmatpush1.xpose.msra.mxu0 0.0
        %2190 = vmatprep.subr.mxu0 0.0
        %2191 = vmatpush1.xpose.msra.mxu0 0.0
        %2192 = vmatprep.subr.mxu0 0.0
        %2193 = vmatpush1.xpose.msra.mxu0 0.0
        %2194 = vmatprep.subr.mxu0 0.0
        %2195 = vmatpush1.xpose.msra.mxu0 0.0
        %2196 = vmatprep.subr.mxu0 0.0
        %2197 = vmatpush1.xpose.msra.mxu0 0.0
        %2198 = vmatprep.subr.mxu0 0.0
        %2199 = vmatpush1.xpose.msra.mxu0 0.0
        %2200 = vmatprep.subr.mxu0 0.0
        %2201 = vmatpush1.xpose.msra.mxu0 0.0
        %2202 = vmatprep.subr.mxu0 0.0
        %2203 = vmatpush1.xpose.msra.mxu0 0.0
        %2204 = vmatprep.subr.mxu0 0.0
        %2205 = vmatpush1.xpose.msra.mxu0 0.0
        %2206 = vmatprep.subr.mxu0 0.0
        %2207 = vmatpush1.xpose.msra.mxu0 0.0
        %2208 = vmatprep.subr.mxu0 0.0
        %2209 = vmatpush1.xpose.msra.mxu0 0.0
        %2210 = vmatprep.subr.mxu0 0.0
        %2211 = vmatpush1.xpose.msra.mxu0 0.0
        %2212 = vmatprep.subr.mxu0 0.0
        %2213 = vmatpush1.xpose.msra.mxu0 0.0
        %2214 = vmatprep.subr.mxu0 0.0
        %2215 = vmatpush1.xpose.msra.mxu0 0.0
        %2216 = vmatprep.mubr.f32.mxu0 0.0
        %2217 = vmatmul.mubr.f32.gmra.mrb[0].mxu0 %v2147
        %v2218 = vpop.f32.mrb[0].mxu0
        %v2219 = vadd.f32 0.0, %v2218
        %v2220 = vpop.f32.mrb[0].mxu0
        %2221 = vdwg.mxu0
        %v2222 = vsel %vm753, %v2219, -inf
        %2223 = vmax.xlane.f32.xlu0 %v2222
        %v2224 = vpop.xlane.xlu0 %2223
        %v2225 = vsub.f32 %v2219, %v2224
        %v2226 = vmul.f32 %v2225, 1.442695
        %v2227 = vpow.pop %v2226
        %v2228 = vsel %vm753, %v2227, 0.0
        %2229 = vadd.xlane.f32.xlu0 %v2228
        %v2230 = vpop.xlane.xlu0 %2229
        %v2231 = vrcp.pop %v2230
        %v2232 = vmul.f32 %v2227, %v2231
        %v2234 = vsel %vm753, %v2232, 0
        %2236 = vmatprep.subr.mxu0 0.0
        %2237 = vmatpush1.msra.mxu0 %v670
        %2238 = vmatprep.subr.mxu0 0.0
        %2239 = vmatpush1.msra.mxu0 0.0
        %2240 = vmatprep.subr.mxu0 0.0
        %2241 = vmatpush1.msra.mxu0 0.0
        %2242 = vmatprep.subr.mxu0 0.0
        %2243 = vmatpush1.msra.mxu0 0.0
        %2244 = vmatprep.subr.mxu0 0.0
        %2245 = vmatpush1.msra.mxu0 0.0
        %2246 = vmatprep.subr.mxu0 0.0
        %2247 = vmatpush1.msra.mxu0 0.0
        %2248 = vmatprep.subr.mxu0 0.0
        %2249 = vmatpush1.msra.mxu0 0.0
        %2250 = vmatprep.subr.mxu0 0.0
        %2251 = vmatpush1.msra.mxu0 0.0
        %2252 = vmatprep.subr.mxu0 0.0
        %2253 = vmatpush1.msra.mxu0 0.0
        %2254 = vmatprep.subr.mxu0 0.0
        %2255 = vmatpush1.msra.mxu0 0.0
        %2256 = vmatprep.subr.mxu0 0.0
        %2257 = vmatpush1.msra.mxu0 0.0
        %2258 = vmatprep.subr.mxu0 0.0
        %2259 = vmatpush1.msra.mxu0 0.0
        %2260 = vmatprep.subr.mxu0 0.0
        %2261 = vmatpush1.msra.mxu0 0.0
        %2262 = vmatprep.subr.mxu0 0.0
        %2263 = vmatpush1.msra.mxu0 0.0
        %2264 = vmatprep.subr.mxu0 0.0
        %2265 = vmatpush1.msra.mxu0 0.0
        %2266 = vmatprep.subr.mxu0 0.0
        %2267 = vmatpush1.msra.mxu0 0.0
        %2268 = vmatprep.subr.mxu0 0.0
        %2269 = vmatpush1.msra.mxu0 0.0
        %2270 = vmatprep.subr.mxu0 0.0
        %2271 = vmatpush1.msra.mxu0 0.0
        %2272 = vmatprep.subr.mxu0 0.0
        %2273 = vmatpush1.msra.mxu0 0.0
        %2274 = vmatprep.subr.mxu0 0.0
        %2275 = vmatpush1.msra.mxu0 0.0
        %2276 = vmatprep.subr.mxu0 0.0
        %2277 = vmatpush1.msra.mxu0 0.0
        %2278 = vmatprep.subr.mxu0 0.0
        %2279 = vmatpush1.msra.mxu0 0.0
        %2280 = vmatprep.subr.mxu0 0.0
        %2281 = vmatpush1.msra.mxu0 0.0
        %2282 = vmatprep.subr.mxu0 0.0
        %2283 = vmatpush1.msra.mxu0 0.0
        %2284 = vmatprep.subr.mxu0 0.0
        %2285 = vmatpush1.msra.mxu0 0.0
        %2286 = vmatprep.subr.mxu0 0.0
        %2287 = vmatpush1.msra.mxu0 0.0
        %2288 = vmatprep.subr.mxu0 0.0
        %2289 = vmatpush1.msra.mxu0 0.0
        %2290 = vmatprep.subr.mxu0 0.0
        %2291 = vmatpush1.msra.mxu0 0.0
        %2292 = vmatprep.subr.mxu0 0.0
        %2293 = vmatpush1.msra.mxu0 0.0
        %2294 = vmatprep.subr.mxu0 0.0
        %2295 = vmatpush1.msra.mxu0 0.0
        %2296 = vmatprep.subr.mxu0 0.0
        %2297 = vmatpush1.msra.mxu0 0.0
        %2298 = vmatprep.subr.mxu0 0.0
        %2299 = vmatpush1.msra.mxu0 0.0
        %2300 = vmatprep.mubr.f32.mxu0 0.0
        %2301 = vmatmul.mubr.f32.gmra.mrb[0].mxu0 %v2234
        %v2302 = vpop.f32.mrb[0].mxu0
        %v2303 = vadd.f32 0.0, %v2302
        %v2304 = vpop.f32.mrb[0].mxu0
        %2305 = vdwg.mxu0
        %v2306 = vld [vmem:[%s2 + $0x180] sm:$0xff]
        %v2307 = vld [vmem:[%s2 + $0x188] sm:$0xff]
        %v2308 = vld [vmem:[%s2 + $0x190] sm:$0xff]
        %v2309 = vld [vmem:[%s2 + $0x198] sm:$0xff]
        %v2310 = vld [vmem:[%s2 + $0x1a0] sm:$0xff]
        %v2311 = vld [vmem:[%s2 + $0x1a8] sm:$0xff]
        %v2312 = vld [vmem:[%s2 + $0x1b0] sm:$0xff]
        %v2313 = vld [vmem:[%s2 + $0x1b8] sm:$0xff]
        %v2315 = vsel %vm676, %v2303, 0
        %2317 = vmatprep.subr.mxu0 0.0
        %2318 = vmatpush1.msra.mxu0 %v2306
        %2319 = vmatprep.subr.mxu0 0.0
        %2320 = vmatpush1.msra.mxu0 %v2307
        %2321 = vmatprep.subr.mxu0 0.0
        %2322 = vmatpush1.msra.mxu0 %v2308
        %2323 = vmatprep.subr.mxu0 0.0
        %2324 = vmatpush1.msra.mxu0 %v2309
        %2325 = vmatprep.subr.mxu0 0.0
        %2326 = vmatpush1.msra.mxu0 %v2310
        %2327 = vmatprep.subr.mxu0 0.0
        %2328 = vmatpush1.msra.mxu0 %v2311
        %2329 = vmatprep.subr.mxu0 0.0
        %2330 = vmatpush1.msra.mxu0 %v2312
        %2331 = vmatprep.subr.mxu0 0.0
        %2332 = vmatpush1.msra.mxu0 %v2313
        %2333 = vmatprep.subr.mxu0 0.0
        %2334 = vmatpush1.msra.mxu0 0.0
        %2335 = vmatprep.subr.mxu0 0.0
        %2336 = vmatpush1.msra.mxu0 0.0
        %2337 = vmatprep.subr.mxu0 0.0
        %2338 = vmatpush1.msra.mxu0 0.0
        %2339 = vmatprep.subr.mxu0 0.0
        %2340 = vmatpush1.msra.mxu0 0.0
        %2341 = vmatprep.subr.mxu0 0.0
        %2342 = vmatpush1.msra.mxu0 0.0
        %2343 = vmatprep.subr.mxu0 0.0
        %2344 = vmatpush1.msra.mxu0 0.0
        %2345 = vmatprep.subr.mxu0 0.0
        %2346 = vmatpush1.msra.mxu0 0.0
        %2347 = vmatprep.subr.mxu0 0.0
        %2348 = vmatpush1.msra.mxu0 0.0
        %2349 = vmatprep.subr.mxu0 0.0
        %2350 = vmatpush1.msra.mxu0 0.0
        %2351 = vmatprep.subr.mxu0 0.0
        %2352 = vmatpush1.msra.mxu0 0.0
        %2353 = vmatprep.subr.mxu0 0.0
        %2354 = vmatpush1.msra.mxu0 0.0
        %2355 = vmatprep.subr.mxu0 0.0
        %2356 = vmatpush1.msra.mxu0 0.0
        %2357 = vmatprep.subr.mxu0 0.0
        %2358 = vmatpush1.msra.mxu0 0.0
        %2359 = vmatprep.subr.mxu0 0.0
        %2360 = vmatpush1.msra.mxu0 0.0
        %2361 = vmatprep.subr.mxu0 0.0
        %2362 = vmatpush1.msra.mxu0 0.0
        %2363 = vmatprep.subr.mxu0 0.0
        %2364 = vmatpush1.msra.mxu0 0.0
        %2365 = vmatprep.subr.mxu0 0.0
        %2366 = vmatpush1.msra.mxu0 0.0
        %2367 = vmatprep.subr.mxu0 0.0
        %2368 = vmatpush1.msra.mxu0 0.0
        %2369 = vmatprep.subr.mxu0 0.0
        %2370 = vmatpush1.msra.mxu0 0.0
        %2371 = vmatprep.subr.mxu0 0.0
        %2372 = vmatpush1.msra.mxu0 0.0
        %2373 = vmatprep.subr.mxu0 0.0
        %2374 = vmatpush1.msra.mxu0 0.0
        %2375 = vmatprep.subr.mxu0 0.0
        %2376 = vmatpush1.msra.mxu0 0.0
        %2377 = vmatprep.subr.mxu0 0.0
        %2378 = vmatpush1.msra.mxu0 0.0
        %2379 = vmatprep.subr.mxu0 0.0
        %2380 = vmatpush1.msra.mxu0 0.0
        %2381 = vmatprep.mubr.f32.mxu0 0.0
        %2382 = vmatmul.mubr.f32.gmra.mrb[0].mxu0 %v2315
        %v2383 = vpop.f32.mrb[0].mxu0
        %v2384 = vadd.f32 0.0, %v2383
        %v2385 = vpop.f32.mrb[0].mxu0
        %2386 = vdwg.mxu0
        %v2387 = vadd.f32 %v2145, %v2384
        %2388 = vrot.lane.b32.xlu0 %v675, 64
        %v2389 = vpop.permute.xlu0 %2388
        %2390 = vrot.lane.b32.xlu0 %v528, 64
        %v2391 = vpop.permute.xlu0 %2390
        %v2392 = vsel %vm676, %v2389, 0
        %v2394 = vsel %vm676, %v2391, 0
        %2396 = vmatprep.subr.mxu0 0.0
        %2397 = vmatpush1.xpose.msra.mxu0 %v2394
        %2398 = vmatprep.subr.mxu0 0.0
        %2399 = vmatpush1.xpose.msra.mxu0 0.0
        %2400 = vmatprep.subr.mxu0 0.0
        %2401 = vmatpush1.xpose.msra.mxu0 0.0
        %2402 = vmatprep.subr.mxu0 0.0
        %2403 = vmatpush1.xpose.msra.mxu0 0.0
        %2404 = vmatprep.subr.mxu0 0.0
        %2405 = vmatpush1.xpose.msra.mxu0 0.0
        %2406 = vmatprep.subr.mxu0 0.0
        %2407 = vmatpush1.xpose.msra.mxu0 0.0
        %2408 = vmatprep.subr.mxu0 0.0
        %2409 = vmatpush1.xpose.msra.mxu0 0.0
        %2410 = vmatprep.subr.mxu0 0.0
        %2411 = vmatpush1.xpose.msra.mxu0 0.0
        %2412 = vmatprep.subr.mxu0 0.0
        %2413 = vmatpush1.xpose.msra.mxu0 0.0
        %2414 = vmatprep.subr.mxu0 0.0
        %2415 = vmatpush1.xpose.msra.mxu0 0.0
        %2416 = vmatprep.subr.mxu0 0.0
        %2417 = vmatpush1.xpose.msra.mxu0 0.0
        %2418 = vmatprep.subr.mxu0 0.0
        %2419 = vmatpush1.xpose.msra.mxu0 0.0
        %2420 = vmatprep.subr.mxu0 0.0
        %2421 = vmatpush1.xpose.msra.mxu0 0.0
        %2422 = vmatprep.subr.mxu0 0.0
        %2423 = vmatpush1.xpose.msra.mxu0 0.0
        %2424 = vmatprep.subr.mxu0 0.0
        %2425 = vmatpush1.xpose.msra.mxu0 0.0
        %2426 = vmatprep.subr.mxu0 0.0
        %2427 = vmatpush1.xpose.msra.mxu0 0.0
        %2428 = vmatprep.subr.mxu0 0.0
        %2429 = vmatpush1.xpose.msra.mxu0 0.0
        %2430 = vmatprep.subr.mxu0 0.0
        %2431 = vmatpush1.xpose.msra.mxu0 0.0
        %2432 = vmatprep.subr.mxu0 0.0
        %2433 = vmatpush1.xpose.msra.mxu0 0.0
        %2434 = vmatprep.subr.mxu0 0.0
        %2435 = vmatpush1.xpose.msra.mxu0 0.0
        %2436 = vmatprep.subr.mxu0 0.0
        %2437 = vmatpush1.xpose.msra.mxu0 0.0
        %2438 = vmatprep.subr.mxu0 0.0
        %2439 = vmatpush1.xpose.msra.mxu0 0.0
        %2440 = vmatprep.subr.mxu0 0.0
        %2441 = vmatpush1.xpose.msra.mxu0 0.0
        %2442 = vmatprep.subr.mxu0 0.0
        %2443 = vmatpush1.xpose.msra.mxu0 0.0
        %2444 = vmatprep.subr.mxu0 0.0
        %2445 = vmatpush1.xpose.msra.mxu0 0.0
        %2446 = vmatprep.subr.mxu0 0.0
        %2447 = vmatpush1.xpose.msra.mxu0 0.0
        %2448 = vmatprep.subr.mxu0 0.0
        %2449 = vmatpush1.xpose.msra.mxu0 0.0
        %2450 = vmatprep.subr.mxu0 0.0
        %2451 = vmatpush1.xpose.msra.mxu0 0.0
        %2452 = vmatprep.subr.mxu0 0.0
        %2453 = vmatpush1.xpose.msra.mxu0 0.0
        %2454 = vmatprep.subr.mxu0 0.0
        %2455 = vmatpush1.xpose.msra.mxu0 0.0
        %2456 = vmatprep.subr.mxu0 0.0
        %2457 = vmatpush1.xpose.msra.mxu0 0.0
        %2458 = vmatprep.subr.mxu0 0.0
        %2459 = vmatpush1.xpose.msra.mxu0 0.0
        %2460 = vmatprep.mubr.f32.mxu0 0.0
        %2461 = vmatmul.mubr.f32.gmra.mrb[0].mxu0 %v2392
        %v2462 = vpop.f32.mrb[0].mxu0
        %v2463 = vadd.f32 0.0, %v2462
        %v2464 = vpop.f32.mrb[0].mxu0
        %2465 = vdwg.mxu0
        %v2466 = vsel %vm753, %v2463, -inf
        %2467 = vmax.xlane.f32.xlu0 %v2466
        %v2468 = vpop.xlane.xlu0 %2467
        %v2469 = vsub.f32 %v2463, %v2468
        %v2470 = vmul.f32 %v2469, 1.442695
        %v2471 = vpow.pop %v2470
        %v2472 = vsel %vm753, %v2471, 0.0
        %2473 = vadd.xlane.f32.xlu0 %v2472
        %v2474 = vpop.xlane.xlu0 %2473
        %v2475 = vrcp.pop %v2474
        %v2476 = vmul.f32 %v2471, %v2475
        %2478 = vrot.lane.b32.xlu0 %v670, 64
        %v2479 = vpop.permute.xlu0 %2478
        %v2482 = vsel %vm753, %v2476, 0
        %2484 = vmatprep.subr.mxu0 0.0
        %2485 = vmatpush1.msra.mxu0 %v2479
        %2486 = vmatprep.subr.mxu0 0.0
        %2487 = vmatpush1.msra.mxu0 0.0
        %2488 = vmatprep.subr.mxu0 0.0
        %2489 = vmatpush1.msra.mxu0 0.0
        %2490 = vmatprep.subr.mxu0 0.0
        %2491 = vmatpush1.msra.mxu0 0.0
        %2492 = vmatprep.subr.mxu0 0.0
        %2493 = vmatpush1.msra.mxu0 0.0
        %2494 = vmatprep.subr.mxu0 0.0
        %2495 = vmatpush1.msra.mxu0 0.0
        %2496 = vmatprep.subr.mxu0 0.0
        %2497 = vmatpush1.msra.mxu0 0.0
        %2498 = vmatprep.subr.mxu0 0.0
        %2499 = vmatpush1.msra.mxu0 0.0
        %2500 = vmatprep.subr.mxu0 0.0
        %2501 = vmatpush1.msra.mxu0 0.0
        %2502 = vmatprep.subr.mxu0 0.0
        %2503 = vmatpush1.msra.mxu0 0.0
        %2504 = vmatprep.subr.mxu0 0.0
        %2505 = vmatpush1.msra.mxu0 0.0
        %2506 = vmatprep.subr.mxu0 0.0
        %2507 = vmatpush1.msra.mxu0 0.0
        %2508 = vmatprep.subr.mxu0 0.0
        %2509 = vmatpush1.msra.mxu0 0.0
        %2510 = vmatprep.subr.mxu0 0.0
        %2511 = vmatpush1.msra.mxu0 0.0
        %2512 = vmatprep.subr.mxu0 0.0
        %2513 = vmatpush1.msra.mxu0 0.0
        %2514 = vmatprep.subr.mxu0 0.0
        %2515 = vmatpush1.msra.mxu0 0.0
        %2516 = vmatprep.subr.mxu0 0.0
        %2517 = vmatpush1.msra.mxu0 0.0
        %2518 = vmatprep.subr.mxu0 0.0
        %2519 = vmatpush1.msra.mxu0 0.0
        %2520 = vmatprep.subr.mxu0 0.0
        %2521 = vmatpush1.msra.mxu0 0.0
        %2522 = vmatprep.subr.mxu0 0.0
        %2523 = vmatpush1.msra.mxu0 0.0
        %2524 = vmatprep.subr.mxu0 0.0
        %2525 = vmatpush1.msra.mxu0 0.0
        %2526 = vmatprep.subr.mxu0 0.0
        %2527 = vmatpush1.msra.mxu0 0.0
        %2528 = vmatprep.subr.mxu0 0.0
        %2529 = vmatpush1.msra.mxu0 0.0
        %2530 = vmatprep.subr.mxu0 0.0
        %2531 = vmatpush1.msra.mxu0 0.0
        %2532 = vmatprep.subr.mxu0 0.0
        %2533 = vmatpush1.msra.mxu0 0.0
        %2534 = vmatprep.subr.mxu0 0.0
        %2535 = vmatpush1.msra.mxu0 0.0
        %2536 = vmatprep.subr.mxu0 0.0
        %2537 = vmatpush1.msra.mxu0 0.0
        %2538 = vmatprep.subr.mxu0 0.0
        %2539 = vmatpush1.msra.mxu0 0.0
        %2540 = vmatprep.subr.mxu0 0.0
        %2541 = vmatpush1.msra.mxu0 0.0
        %2542 = vmatprep.subr.mxu0 0.0
        %2543 = vmatpush1.msra.mxu0 0.0
        %2544 = vmatprep.subr.mxu0 0.0
        %2545 = vmatpush1.msra.mxu0 0.0
        %2546 = vmatprep.subr.mxu0 0.0
        %2547 = vmatpush1.msra.mxu0 0.0
        %2548 = vmatprep.mubr.f32.mxu0 0.0
        %2549 = vmatmul.mubr.f32.gmra.mrb[0].mxu0 %v2482
        %v2550 = vpop.f32.mrb[0].mxu0
        %v2551 = vadd.f32 0.0, %v2550
        %v2552 = vpop.f32.mrb[0].mxu0
        %2553 = vdwg.mxu0
        %v2554 = vld [vmem:[%s2 + $0x1c0] sm:$0xff]
        %v2555 = vld [vmem:[%s2 + $0x1c8] sm:$0xff]
        %v2556 = vld [vmem:[%s2 + $0x1d0] sm:$0xff]
        %v2557 = vld [vmem:[%s2 + $0x1d8] sm:$0xff]
        %v2558 = vld [vmem:[%s2 + $0x1e0] sm:$0xff]
        %v2559 = vld [vmem:[%s2 + $0x1e8] sm:$0xff]
        %v2560 = vld [vmem:[%s2 + $0x1f0] sm:$0xff]
        %v2561 = vld [vmem:[%s2 + $0x1f8] sm:$0xff]
        %v2563 = vsel %vm676, %v2551, 0
        %2565 = vmatprep.subr.mxu0 0.0
        %2566 = vmatpush1.msra.mxu0 %v2554
        %2567 = vmatprep.subr.mxu0 0.0
        %2568 = vmatpush1.msra.mxu0 %v2555
        %2569 = vmatprep.subr.mxu0 0.0
        %2570 = vmatpush1.msra.mxu0 %v2556
        %2571 = vmatprep.subr.mxu0 0.0
        %2572 = vmatpush1.msra.mxu0 %v2557
        %2573 = vmatprep.subr.mxu0 0.0
        %2574 = vmatpush1.msra.mxu0 %v2558
        %2575 = vmatprep.subr.mxu0 0.0
        %2576 = vmatpush1.msra.mxu0 %v2559
        %2577 = vmatprep.subr.mxu0 0.0
        %2578 = vmatpush1.msra.mxu0 %v2560
        %2579 = vmatprep.subr.mxu0 0.0
        %2580 = vmatpush1.msra.mxu0 %v2561
        %2581 = vmatprep.subr.mxu0 0.0
        %2582 = vmatpush1.msra.mxu0 0.0
        %2583 = vmatprep.subr.mxu0 0.0
        %2584 = vmatpush1.msra.mxu0 0.0
        %2585 = vmatprep.subr.mxu0 0.0
        %2586 = vmatpush1.msra.mxu0 0.0
        %2587 = vmatprep.subr.mxu0 0.0
        %2588 = vmatpush1.msra.mxu0 0.0
        %2589 = vmatprep.subr.mxu0 0.0
        %2590 = vmatpush1.msra.mxu0 0.0
        %2591 = vmatprep.subr.mxu0 0.0
        %2592 = vmatpush1.msra.mxu0 0.0
        %2593 = vmatprep.subr.mxu0 0.0
        %2594 = vmatpush1.msra.mxu0 0.0
        %2595 = vmatprep.subr.mxu0 0.0
        %2596 = vmatpush1.msra.mxu0 0.0
        %2597 = vmatprep.subr.mxu0 0.0
        %2598 = vmatpush1.msra.mxu0 0.0
        %2599 = vmatprep.subr.mxu0 0.0
        %2600 = vmatpush1.msra.mxu0 0.0
        %2601 = vmatprep.subr.mxu0 0.0
        %2602 = vmatpush1.msra.mxu0 0.0
        %2603 = vmatprep.subr.mxu0 0.0
        %2604 = vmatpush1.msra.mxu0 0.0
        %2605 = vmatprep.subr.mxu0 0.0
        %2606 = vmatpush1.msra.mxu0 0.0
        %2607 = vmatprep.subr.mxu0 0.0
        %2608 = vmatpush1.msra.mxu0 0.0
        %2609 = vmatprep.subr.mxu0 0.0
        %2610 = vmatpush1.msra.mxu0 0.0
        %2611 = vmatprep.subr.mxu0 0.0
        %2612 = vmatpush1.msra.mxu0 0.0
        %2613 = vmatprep.subr.mxu0 0.0
        %2614 = vmatpush1.msra.mxu0 0.0
        %2615 = vmatprep.subr.mxu0 0.0
        %2616 = vmatpush1.msra.mxu0 0.0
        %2617 = vmatprep.subr.mxu0 0.0
        %2618 = vmatpush1.msra.mxu0 0.0
        %2619 = vmatprep.subr.mxu0 0.0
        %2620 = vmatpush1.msra.mxu0 0.0
        %2621 = vmatprep.subr.mxu0 0.0
        %2622 = vmatpush1.msra.mxu0 0.0
        %2623 = vmatprep.subr.mxu0 0.0
        %2624 = vmatpush1.msra.mxu0 0.0
        %2625 = vmatprep.subr.mxu0 0.0
        %2626 = vmatpush1.msra.mxu0 0.0
        %2627 = vmatprep.subr.mxu0 0.0
        %2628 = vmatpush1.msra.mxu0 0.0
        %2629 = vmatprep.mubr.f32.mxu0 0.0
        %2630 = vmatmul.mubr.f32.gmra.mrb[0].mxu0 %v2563
        %v2631 = vpop.f32.mrb[0].mxu0
        %v2632 = vadd.f32 0.0, %v2631
        %v2633 = vpop.f32.mrb[0].mxu0
        %2634 = vdwg.mxu0
        %v2635 = vadd.f32 %v2387, %v2632
        %v2636 = vld [vmem:[%s3] sm:$0x1]
        %v2638 = vlaneseq
        %v2639 = vshrl.u32 %v2638, 7
        %v2640 = vsub.s32 0, %v2639
        %v2641 = vrot.slane %v2636, %v2640
        %v2643 = vadd.f32 %v2635, %v2641
        %2644 = vst.msk [vmem:[%s188] sm:$0xff] %vm242, %v2643
        %s2645 = sand.u32 %s115, 1
        %s2646 = scalar_lea.sflag [#allocation3], %s2645
        %s2647 = sand.u32 %s115, 1
        %s2648 = smul.addr %s2647, 8
        %s2649 = scalar_lea.vmem [#allocation2], %s2648
        // Predicated region
        $region37: #{tpu_custom_call.1} parent=35 // pred_check
          %p2650 = pneg %p125
        $region38: #{tpu_custom_call.1} parent=35 // pred_check_branch
          %2652 = sbr.rel (%p2650) target = $region40
        $region39: #{tpu_custom_call.1} parent=35 // pred_region
          %s2654 = ssub.s32 128, 128
          %2655 = vsyncadd %s2646, %s2654
          %s2656 = smul.addr %s18, 128
          %s2657 = scalar_lea.hbm %s4, %s2656
          %s2659 = sshll.u32 %s2649, 4
          %s2660 = int_to_ptr.vmem [resolvable:$true] %s2659
          %2662 = dma.vmem_to_hbm [thread:$0]  %s2660, 128, %s2657, %s2646
        $region40: #{tpu_custom_call.1} parent=35 // pred_fallthru
          _
      $region36: #{tpu_custom_call.1} parent=5 // pred_fallthru
        _
      %p2663 = scmp.le.s32.totalorder 2, %s13
      // Predicated region
      $region41: #{tpu_custom_call.1} parent=5 // pred_check
        %p2664 = pneg %p2663
      $region42: #{tpu_custom_call.1} parent=5 // pred_check_branch
        %2666 = sbr.rel (%p2664) target = $region44
      $region43: #{tpu_custom_call.1} parent=5 // pred_region
        %s2667 = ssub.s32 %s13, 2
        // Predicated region
        $region45: #{tpu_custom_call.1} parent=43 // pred_check
          %p2668 = pneg %p131
        $region46: #{tpu_custom_call.1} parent=43 // pred_check_branch
          %2670 = sbr.rel (%p2668) target = $region48
        $region47: #{tpu_custom_call.1} parent=43 // pred_region
          %s2671 = sand.u32 %s116, 1
          %s2672 = scalar_lea.sflag [#allocation3], %s2671
          %s2673 = sand.u32 %s116, 1
          %s2674 = smul.addr %s2673, 8
          %s2675 = scalar_lea.vmem [#allocation2], %s2674
          %2676 = dma.done %s2672, 128
        $region48: #{tpu_custom_call.1} parent=43 // pred_fallthru
          _
      $region44: #{tpu_custom_call.1} parent=5 // pred_fallthru
        _
    $region6: #{tpu_custom_call.1} parent=1 // loop_footer
      %s17 = sadd.s32 1, %s13
    $region7: #{tpu_custom_call.1} parent=1 // loop_footer_branch
      %12 = sbr.rel target = $region3
    $region8: #{tpu_custom_call.1} parent=1 // loop_exit
      _
    %2677 = vsyncpa [#allocation3], 1
    %s2678 = scalar_lea.sflag [#allocation3], 1
    %2679 = vsyncpa %s2678, 1

</llo_original>
